<compile_context>
chip_gen: v7x
topology: tpu7x:2x2x1
jax: 0.10.0
libtpu: 0.0.40
codegen_flags: <defaults>
</compile_context>

<pallas_src>
import jax
import jax.numpy as jnp
from jax.experimental import pallas as pl
from jax.experimental.pallas import tpu as pltpu


def _dnn_kernel(x_ref, w1_ref, b1_ref, w2_ref, b2_ref, w3_ref, b3_ref, out_ref):
    # x_ref: (TILE_B, D_in) f32 ; w1/w2/w3 refs bf16 ; biases f32.

    # fc1 + ReLU  (cast x to bf16 here; hides under the x DMA, f32 MXU acc)
    x = x_ref[...].astype(jnp.bfloat16)
    h = jnp.dot(x, w1_ref[...], preferred_element_type=jnp.float32)
    h = jnp.maximum(h + b1_ref[...], 0.0)                    # (TILE_B, H1) f32
    # TODO(synk): dropout omitted (inference / eval mode -> identity)

    # fc2 + ReLU  (bf16 operands, f32 accumulation)
    h = jnp.dot(h.astype(jnp.bfloat16), w2_ref[...],
                preferred_element_type=jnp.float32)
    h = jnp.maximum(h + b2_ref[...], 0.0)                    # (TILE_B, H2) f32

    # fc3 (H2 -> 1): computed as (1, H2) . (TILE_B, H2)^T -> (1, TILE_B) so the
    # result is lane-dense (batch on lanes) and the output store is full width.
    y = jax.lax.dot_general(
        w3_ref[...], h.astype(jnp.bfloat16),
        dimension_numbers=(((1,), (1,)), ((), ())),
        preferred_element_type=jnp.float32)                  # (1, TILE_B)
    out_ref[...] = (y + b3_ref[...]).astype(out_ref.dtype)


def _round_up(v, m):
    return ((v + m - 1) // m) * m


def _pick_tile_b(b, max_tile=1024):
    # Multiple of 128 (output last dim / x sublane alignment), >= 2 grid tiles
    # when B allows it (v7x has 2 TensorCores), capped so double-buffered f32 x
    # tiles stay far below v5e's 16 MiB default scoped-VMEM limit.
    return min(max_tile, _round_up(pl.cdiv(b, 2), 128))


def dnn_forward(x, params, *, max_tile_b=1024):
    """x: (B, D_in) float32.  params: dict of (in, out) weights / (1, out) biases."""
    B, d_in = x.shape
    w1, b1 = params["w1"], params["b1"]
    w2, b2 = params["w2"], params["b2"]
    w3, b3 = params["w3"], params["b3"]
    h1 = w1.shape[1]
    h2 = w2.shape[1]

    tile_b = _pick_tile_b(B, max_tile_b)
    num_tiles = pl.cdiv(B, tile_b)
    b_pad = num_tiles * tile_b

    # Pad only the batch remainder (at most one tile, only for ragged B).
    # Padded rows compute ReLU(b1) -> ... garbage that is sliced away below;
    # safe because all ops are row-independent.
    x_in = x if b_pad == B else jnp.zeros((b_pad, d_in), x.dtype).at[:B].set(x)

    # One-time tiny casts; these operands stay resident in VMEM across the grid.
    w1_b = w1.astype(jnp.bfloat16)
    w2_b = w2.astype(jnp.bfloat16)
    w3_row = w3.reshape(1, h2).astype(jnp.bfloat16)          # (H2,1) -> (1,H2)

    flops = 2 * b_pad * (d_in * h1 + h1 * h2 + h2)
    bytes_accessed = (x_in.size * 4 + b_pad * 4 +
                      (w1_b.size + w2_b.size + w3_row.size) * 2 +
                      (b1.size + b2.size + b3.size) * 4)

    out = pl.pallas_call(
        _dnn_kernel,
        out_shape=jax.ShapeDtypeStruct((1, b_pad), jnp.float32),
        grid=(num_tiles,),
        in_specs=[
            pl.BlockSpec((tile_b, d_in), lambda i: (i, 0)),   # x: streamed per tile
            pl.BlockSpec((d_in, h1), lambda i: (0, 0)),       # w1 (bf16, resident)
            pl.BlockSpec((1, h1), lambda i: (0, 0)),          # b1
            pl.BlockSpec((h1, h2), lambda i: (0, 0)),         # w2 (bf16, resident)
            pl.BlockSpec((1, h2), lambda i: (0, 0)),          # b2
            pl.BlockSpec((1, h2), lambda i: (0, 0)),          # w3 (bf16 row vector)
            pl.BlockSpec((1, 1), lambda i: (0, 0)),           # b3
        ],
        out_specs=pl.BlockSpec((1, tile_b), lambda i: (0, i)),
        compiler_params=pltpu.CompilerParams(
            dimension_semantics=("parallel",)),
        cost_estimate=pl.CostEstimate(
            flops=flops, transcendentals=0, bytes_accessed=bytes_accessed),
    )(x_in, w1_b, b1, w2_b, b2, w3_row, b3)

    # (1, B_pad) -> (B,)   == x.squeeze(1) in the PyTorch module
    return out[0, :B]


def init_params(key, d_in, layer_sizes):
    """Deterministic init. Weights stored (in, out); biases (1, out)."""
    dims = [d_in] + list(layer_sizes) + [1]
    params = {}
    for i in range(len(dims) - 1):
        key, kw, kb = jax.random.split(key, 3)
        bound = 1.0 / jnp.sqrt(dims[i])        # nn.Linear default init range
        params[f"w{i+1}"] = jax.random.uniform(
            kw, (dims[i], dims[i + 1]), jnp.float32, -bound, bound)
        params[f"b{i+1}"] = jax.random.uniform(
            kb, (1, dims[i + 1]), jnp.float32, -bound, bound)
    return params


def reference_forward_f32(x, params):
    """Pure f32 reference matching the PyTorch module semantics (eval mode)."""
    hp = jax.lax.Precision.HIGHEST
    h = jnp.maximum(jnp.dot(x, params["w1"], precision=hp) + params["b1"], 0.0)
    h = jnp.maximum(jnp.dot(h, params["w2"], precision=hp) + params["b2"], 0.0)
    y = jnp.dot(h, params["w3"], precision=hp) + params["b3"]
    return y[:, 0]


def reference_forward_matched(x, params):
    """Reference replicating the kernel's bf16-operand / f32-accumulate path."""
    hp = jax.lax.Precision.HIGHEST
    f32 = jnp.float32
    xb = x.astype(jnp.bfloat16).astype(f32)
    w1 = params["w1"].astype(jnp.bfloat16).astype(f32)
    w2 = params["w2"].astype(jnp.bfloat16).astype(f32)
    w3 = params["w3"].astype(jnp.bfloat16).astype(f32)
    h = jnp.maximum(jnp.dot(xb, w1, precision=hp) + params["b1"], 0.0)
    h = h.astype(jnp.bfloat16).astype(f32)
    h = jnp.maximum(jnp.dot(h, w2, precision=hp) + params["b2"], 0.0)
    h = h.astype(jnp.bfloat16).astype(f32)
    y = jnp.dot(h, w3, precision=hp) + params["b3"]
    return y[:, 0]


if __name__ == "__main__":
    one_hot_enc_len = 7
    layer_sizes = [64, 32]                    # n_hidden_layers = 2
    d_in = 768 + 1 + one_hot_enc_len          # 776

    key = jax.random.PRNGKey(0)
    key, kx = jax.random.split(key)
    params = init_params(key, d_in, layer_sizes)

    # Main run: B=512 -> tile_b=256, a 2-tile "parallel" batch grid (both v7x TCs).
    batch = 512
    x = jax.random.normal(kx, (batch, d_in), jnp.float32)
    y = jax.block_until_ready(dnn_forward(x, params))
    assert y.shape == (batch,)

    y_match = reference_forward_matched(x, params)
    err_match = float(jnp.max(jnp.abs(y - y_match)))
    assert jnp.allclose(y, y_match, atol=2e-3, rtol=2e-3), err_match

    y_f32 = reference_forward_f32(x, params)
    err_f32 = float(jnp.max(jnp.abs(y - y_f32)))
    assert jnp.allclose(y, y_f32, atol=5e-2, rtol=5e-2), err_f32

    # Ragged batch: exercises the remainder-only pad path (B % tile_b != 0).
    x2 = x[:100]
    y2 = jax.block_until_ready(dnn_forward(x2, params))
    assert y2.shape == (100,)
    y2_ref = reference_forward_matched(x2, params)
    assert jnp.allclose(y2, y2_ref, atol=2e-3, rtol=2e-3), float(
        jnp.max(jnp.abs(y2 - y2_ref)))

    print("KERNEL_OK")
</pallas_src>

<mosaic_0001>
module attributes {stable_mosaic.version = 11 : i64} {
  func.func @_dnn_kernel(%arg0: i32, %arg1: memref<256x776xf32, #tpu.memory_space<vmem>>, %arg2: memref<776x64xbf16, #tpu.memory_space<vmem>>, %arg3: memref<1x64xf32, #tpu.memory_space<vmem>>, %arg4: memref<64x32xbf16, #tpu.memory_space<vmem>>, %arg5: memref<1x32xf32, #tpu.memory_space<vmem>>, %arg6: memref<1x32xbf16, #tpu.memory_space<vmem>>, %arg7: memref<1x1xf32, #tpu.memory_space<vmem>>, %arg8: memref<1x256xf32, #tpu.memory_space<vmem>>) attributes {dimension_semantics = [#tpu.dimension_semantics<parallel>], iteration_bounds = array<i64: 2>, scalar_prefetch = 0 : i64, scratch_operands = 0 : i64, tpu.core_type = #tpu.core_type<tc>, window_params = [{transform_indices = @transform_0, window_bounds = array<i64: 256, 776>}, {pipeline_mode = #tpu.pipeline_mode<synchronous>, transform_indices = @transform_1, window_bounds = array<i64: 776, 64>}, {pipeline_mode = #tpu.pipeline_mode<synchronous>, transform_indices = @transform_2, window_bounds = array<i64: 1, 64>}, {pipeline_mode = #tpu.pipeline_mode<synchronous>, transform_indices = @transform_3, window_bounds = array<i64: 64, 32>}, {pipeline_mode = #tpu.pipeline_mode<synchronous>, transform_indices = @transform_4, window_bounds = array<i64: 1, 32>}, {pipeline_mode = #tpu.pipeline_mode<synchronous>, transform_indices = @transform_5, window_bounds = array<i64: 1, 32>}, {pipeline_mode = #tpu.pipeline_mode<synchronous>, transform_indices = @transform_6, window_bounds = array<i64: 1, 1>}, {transform_indices = @transform_7, window_bounds = array<i64: 1, 256>}]} {
    %c0 = arith.constant 0 : index
    %c0_0 = arith.constant 0 : index
    %0 = vector.load %arg1[%c0, %c0_0] : memref<256x776xf32, #tpu.memory_space<vmem>>, vector<256x776xf32>
    %1 = arith.truncf %0 : vector<256x776xf32> to vector<256x776xbf16>
    %c0_1 = arith.constant 0 : index
    %c0_2 = arith.constant 0 : index
    %2 = vector.load %arg2[%c0_1, %c0_2] : memref<776x64xbf16, #tpu.memory_space<vmem>>, vector<776x64xbf16>
    %cst = arith.constant dense<0.000000e+00> : vector<256x64xf32>
    %3 = tpu.matmul %1, %2, %cst {dimension_numbers = #tpu.dot_dimension_numbers<[1], [0], [0], [1], [0, 0, 1, 1], [], []>} : vector<256x776xbf16>, vector<776x64xbf16>, vector<256x64xf32> -> vector<256x64xf32>
    %c0_3 = arith.constant 0 : index
    %c0_4 = arith.constant 0 : index
    %4 = vector.load %arg3[%c0_3, %c0_4] : memref<1x64xf32, #tpu.memory_space<vmem>>, vector<1x64xf32>
    %5 = vector.broadcast %4 : vector<1x64xf32> to vector<256x64xf32>
    %6 = arith.addf %3, %5 : vector<256x64xf32>
    %cst_5 = arith.constant 0.000000e+00 : f32
    %7 = vector.broadcast %cst_5 : f32 to vector<256x64xf32>
    %8 = arith.maximumf %6, %7 : vector<256x64xf32>
    %9 = arith.truncf %8 : vector<256x64xf32> to vector<256x64xbf16>
    %c0_6 = arith.constant 0 : index
    %c0_7 = arith.constant 0 : index
    %10 = vector.load %arg4[%c0_6, %c0_7] : memref<64x32xbf16, #tpu.memory_space<vmem>>, vector<64x32xbf16>
    %cst_8 = arith.constant dense<0.000000e+00> : vector<256x32xf32>
    %11 = tpu.matmul %9, %10, %cst_8 {dimension_numbers = #tpu.dot_dimension_numbers<[1], [0], [0], [1], [0, 0, 1, 1], [], []>} : vector<256x64xbf16>, vector<64x32xbf16>, vector<256x32xf32> -> vector<256x32xf32>
    %c0_9 = arith.constant 0 : index
    %c0_10 = arith.constant 0 : index
    %12 = vector.load %arg5[%c0_9, %c0_10] : memref<1x32xf32, #tpu.memory_space<vmem>>, vector<1x32xf32>
    %13 = vector.broadcast %12 : vector<1x32xf32> to vector<256x32xf32>
    %14 = arith.addf %11, %13 : vector<256x32xf32>
    %cst_11 = arith.constant 0.000000e+00 : f32
    %15 = vector.broadcast %cst_11 : f32 to vector<256x32xf32>
    %16 = arith.maximumf %14, %15 : vector<256x32xf32>
    %c0_12 = arith.constant 0 : index
    %c0_13 = arith.constant 0 : index
    %17 = vector.load %arg6[%c0_12, %c0_13] : memref<1x32xbf16, #tpu.memory_space<vmem>>, vector<1x32xbf16>
    %18 = arith.truncf %16 : vector<256x32xf32> to vector<256x32xbf16>
    %cst_14 = arith.constant dense<0.000000e+00> : vector<1x256xf32>
    %19 = tpu.matmul %17, %18, %cst_14 {dimension_numbers = #tpu.dot_dimension_numbers<[1], [1], [0], [0], [0, 0, 1, 0], [], []>} : vector<1x32xbf16>, vector<256x32xbf16>, vector<1x256xf32> -> vector<1x256xf32>
    %c0_15 = arith.constant 0 : index
    %c0_16 = arith.constant 0 : index
    %20 = vector.load %arg7[%c0_15, %c0_16] : memref<1x1xf32, #tpu.memory_space<vmem>>, vector<1x1xf32>
    %21 = vector.broadcast %20 : vector<1x1xf32> to vector<1x256xf32>
    %22 = arith.addf %19, %21 : vector<1x256xf32>
    %c0_17 = arith.constant 0 : index
    %c0_18 = arith.constant 0 : index
    %23 = vector.load %arg8[%c0_17, %c0_18] : memref<1x256xf32, #tpu.memory_space<vmem>>, vector<1x256xf32>
    tpu.vector_store %arg8[%c0_17, %c0_18], %22 {strides = array<i32>} : memref<1x256xf32, #tpu.memory_space<vmem>>, vector<1x256xf32>,
    return
  }
  func.func @transform_0(%arg0: i32) -> (i32, i32) {
    %c0_i32 = arith.constant 0 : i32
    %c0_i32_0 = arith.constant 0 : i32
    return %arg0, %c0_i32 : i32, i32
  }
  func.func @transform_1(%arg0: i32) -> (i32, i32) {
    %c0_i32 = arith.constant 0 : i32
    %c0_i32_0 = arith.constant 0 : i32
    %c0_i32_1 = arith.constant 0 : i32
    return %c0_i32, %c0_i32_0 : i32, i32
  }
  func.func @transform_2(%arg0: i32) -> (i32, i32) {
    %c0_i32 = arith.constant 0 : i32
    %c0_i32_0 = arith.constant 0 : i32
    %c0_i32_1 = arith.constant 0 : i32
    return %c0_i32, %c0_i32_0 : i32, i32
  }
  func.func @transform_3(%arg0: i32) -> (i32, i32) {
    %c0_i32 = arith.constant 0 : i32
    %c0_i32_0 = arith.constant 0 : i32
    %c0_i32_1 = arith.constant 0 : i32
    return %c0_i32, %c0_i32_0 : i32, i32
  }
  func.func @transform_4(%arg0: i32) -> (i32, i32) {
    %c0_i32 = arith.constant 0 : i32
    %c0_i32_0 = arith.constant 0 : i32
    %c0_i32_1 = arith.constant 0 : i32
    return %c0_i32, %c0_i32_0 : i32, i32
  }
  func.func @transform_5(%arg0: i32) -> (i32, i32) {
    %c0_i32 = arith.constant 0 : i32
    %c0_i32_0 = arith.constant 0 : i32
    %c0_i32_1 = arith.constant 0 : i32
    return %c0_i32, %c0_i32_0 : i32, i32
  }
  func.func @transform_6(%arg0: i32) -> (i32, i32) {
    %c0_i32 = arith.constant 0 : i32
    %c0_i32_0 = arith.constant 0 : i32
    %c0_i32_1 = arith.constant 0 : i32
    return %c0_i32, %c0_i32_0 : i32, i32
  }
  func.func @transform_7(%arg0: i32) -> (i32, i32) {
    %c0_i32 = arith.constant 0 : i32
    %c0_i32_0 = arith.constant 0 : i32
    return %c0_i32, %arg0 : i32, i32
  }
}

</mosaic_0001>

<llo_original>
// kernel: tpu_custom_call.1
$region0: #{tpu_custom_call.1}
  #allocation0 [shape = 'u32[]', space=smem, size = 0x4, offset = 0x4, fixed_abs, tag = 'smem constant byte address 0x4 - core index']
  #allocation1 [shape = 'u32[144,128]{1,0:T(1,128)}', space=vmem, size = 0x12000, scoped, tag = 'internal scratch']
  #allocation2 [shape = 'f32[1,1]{1,0:T(1,128)S(1)}', space=vmem, size = 0x200, scoped, tag = 'scoped memory for tpu_custom_call.1']
  %s0 = inlined_call_operand.vmem [shape: f32[512,776], index: 0, kind: input, shape index: {}]
  %s1 = inlined_call_operand.vmem [shape: bf16[776,64], index: 1, kind: input, shape index: {}]
  %s2 = inlined_call_operand.vmem [shape: f32[1,64], index: 2, kind: input, shape index: {}]
  %s3 = inlined_call_operand.vmem [shape: bf16[64,32], index: 3, kind: input, shape index: {}]
  %s4 = inlined_call_operand.vmem [shape: f32[1,32], index: 4, kind: input, shape index: {}]
  %s5 = inlined_call_operand.vmem [shape: bf16[1,32], index: 5, kind: input, shape index: {}]
  %s6 = inlined_call_operand.<no memory space> [shape: f32[1,1], index: 6, kind: input, shape index: {}]
  %s7 = inlined_call_operand.hbm [shape: f32[1,512], index: 7, kind: output, shape index: {}]
  %s8 = sld [smem:[#allocation0]]
  $region61: #{tpu_custom_call.1} parent=0
    _
  %s10 = ssub.s32 1, %s8
  %s11 = scalar_select 0, %s10, %s8
  %v12 = vstv %s6
  %13 = vst [vmem:[#allocation2] sm:$0x1] %v12
  $region1: #{tpu_custom_call.1} parent=0
    #allocation3 [shape = 'u8[2048]{0}', space=vmem, size = 0x800, scoped, tag = 'output window, operand 0']
    #allocation4 [shape = 's32[2]{0}', space=sflag, size = 0x8, scoped, tag = 'scoped memory for tpu_custom_call.1']
    %14 = vsyncpa [#allocation4], 0
    %s15 = scalar_lea.sflag [#allocation4], 1
    %16 = vsyncpa %s15, 0
    loop: start=0, step=1, limit=4
    $region2: #{tpu_custom_call.1} parent=1 // loop_pre_header
      _
    $region3: #{tpu_custom_call.1} parent=1 // loop_header
      %s18 = sphi 0, %s22
      %p19 = scmp.ge.s32.totalorder %s18, 4
      %s28 = sphi 0, %s30
      %s31 = sphi 0, %s28
      %s32 = sphi 0, %s31
      %s48 = sphi 0, %s32
      %s52 = sphi 0, %s52
      %s54 = sphi 0, %s52
      %s55 = sphi 0, %s54
      %s69 = sphi 0, %s55
      %s73 = sphi 0, %s73
      %s75 = sphi 0, %s73
      %s76 = sphi 0, %s75
      %s90 = sphi 0, %s76
      %s94 = sphi 0, %s94
      %s96 = sphi 0, %s94
      %s97 = sphi 0, %s96
      %s111 = sphi 0, %s97
      %s115 = sphi 0, %s115
      %s117 = sphi 0, %s115
      %s118 = sphi 0, %s117
      %s132 = sphi 0, %s118
      %s136 = sphi 0, %s136
      %s138 = sphi 0, %s136
      %s139 = sphi 0, %s138
      %s153 = sphi 0, %s139
      %s157 = sphi 0, %s157
      %s159 = sphi 0, %s157
      %s160 = sphi 0, %s159
      %s174 = sphi 0, %s160
      %s180 = sphi 0, %s182
      %s183 = sphi 0, %s180
      %s184 = sphi 0, %s183
      %s200 = sphi 0, %s184
    $region4: #{tpu_custom_call.1} parent=1 // loop_header_branch
      %21 = sbr.rel (%p19) target = $region8
    $region5: #{tpu_custom_call.1} parent=1 // loop_body
      %s23 = ssub.s32 %s18, 1
      %s24 = ssub.s32 %s18, 2
      %s25 = sadd.s32 %s18, 1
      %s26 = ssub.s32 %s18, %s25
      %p27 = scmp.eq.s32.totalorder %s26, 0
      %s29 = sadd.s32 %s28, 1
      %s30 = scalar_select %p27, %s28, %s29
      %p33 = pneg %p27
      %p34 = scmp.eq.s32.totalorder %s18, 1
      %p35 = por %p33, %p34
      %p36 = scmp.ne.s32.totalorder %s28, %s31
      %p37 = scmp.eq.s32.totalorder %s18, 0
      %p38 = por %p36, %p37
      %p39 = scmp.ne.s32.totalorder %s28, %s31
      %p40 = scmp.eq.s32.totalorder %s23, 1
      %p41 = por %p39, %p40
      %p42 = scmp.ne.s32.totalorder %s31, %s32
      %p43 = scmp.eq.s32.totalorder %s23, 0
      %p44 = por %p42, %p43
      %p45 = scmp.ne.s32.totalorder %s31, %s32
      %p46 = scmp.eq.s32.totalorder %s24, 1
      %p47 = por %p45, %p46
      %p49 = scmp.ne.s32.totalorder %s32, %s48
      %p50 = scmp.eq.s32.totalorder %s24, 0
      %p51 = por %p49, %p50
      %s53 = sadd.s32 %s52, 1
      %p56 = scmp.eq.s32.totalorder %s18, 1
      %p57 = scmp.ne.s32.totalorder %s52, %s54
      %p58 = scmp.eq.s32.totalorder %s18, 0
      %p59 = por %p57, %p58
      %p60 = scmp.ne.s32.totalorder %s52, %s54
      %p61 = scmp.eq.s32.totalorder %s23, 1
      %p62 = por %p60, %p61
      %p63 = scmp.ne.s32.totalorder %s54, %s55
      %p64 = scmp.eq.s32.totalorder %s23, 0
      %p65 = por %p63, %p64
      %p66 = scmp.ne.s32.totalorder %s54, %s55
      %p67 = scmp.eq.s32.totalorder %s24, 1
      %p68 = por %p66, %p67
      %p70 = scmp.ne.s32.totalorder %s55, %s69
      %p71 = scmp.eq.s32.totalorder %s24, 0
      %p72 = por %p70, %p71
      %s74 = sadd.s32 %s73, 1
      %p77 = scmp.eq.s32.totalorder %s18, 1
      %p78 = scmp.ne.s32.totalorder %s73, %s75
      %p79 = scmp.eq.s32.totalorder %s18, 0
      %p80 = por %p78, %p79
      %p81 = scmp.ne.s32.totalorder %s73, %s75
      %p82 = scmp.eq.s32.totalorder %s23, 1
      %p83 = por %p81, %p82
      %p84 = scmp.ne.s32.totalorder %s75, %s76
      %p85 = scmp.eq.s32.totalorder %s23, 0
      %p86 = por %p84, %p85
      %p87 = scmp.ne.s32.totalorder %s75, %s76
      %p88 = scmp.eq.s32.totalorder %s24, 1
      %p89 = por %p87, %p88
      %p91 = scmp.ne.s32.totalorder %s76, %s90
      %p92 = scmp.eq.s32.totalorder %s24, 0
      %p93 = por %p91, %p92
      %s95 = sadd.s32 %s94, 1
      %p98 = scmp.eq.s32.totalorder %s18, 1
      %p99 = scmp.ne.s32.totalorder %s94, %s96
      %p100 = scmp.eq.s32.totalorder %s18, 0
      %p101 = por %p99, %p100
      %p102 = scmp.ne.s32.totalorder %s94, %s96
      %p103 = scmp.eq.s32.totalorder %s23, 1
      %p104 = por %p102, %p103
      %p105 = scmp.ne.s32.totalorder %s96, %s97
      %p106 = scmp.eq.s32.totalorder %s23, 0
      %p107 = por %p105, %p106
      %p108 = scmp.ne.s32.totalorder %s96, %s97
      %p109 = scmp.eq.s32.totalorder %s24, 1
      %p110 = por %p108, %p109
      %p112 = scmp.ne.s32.totalorder %s97, %s111
      %p113 = scmp.eq.s32.totalorder %s24, 0
      %p114 = por %p112, %p113
      %s116 = sadd.s32 %s115, 1
      %p119 = scmp.eq.s32.totalorder %s18, 1
      %p120 = scmp.ne.s32.totalorder %s115, %s117
      %p121 = scmp.eq.s32.totalorder %s18, 0
      %p122 = por %p120, %p121
      %p123 = scmp.ne.s32.totalorder %s115, %s117
      %p124 = scmp.eq.s32.totalorder %s23, 1
      %p125 = por %p123, %p124
      %p126 = scmp.ne.s32.totalorder %s117, %s118
      %p127 = scmp.eq.s32.totalorder %s23, 0
      %p128 = por %p126, %p127
      %p129 = scmp.ne.s32.totalorder %s117, %s118
      %p130 = scmp.eq.s32.totalorder %s24, 1
      %p131 = por %p129, %p130
      %p133 = scmp.ne.s32.totalorder %s118, %s132
      %p134 = scmp.eq.s32.totalorder %s24, 0
      %p135 = por %p133, %p134
      %s137 = sadd.s32 %s136, 1
      %p140 = scmp.eq.s32.totalorder %s18, 1
      %p141 = scmp.ne.s32.totalorder %s136, %s138
      %p142 = scmp.eq.s32.totalorder %s18, 0
      %p143 = por %p141, %p142
      %p144 = scmp.ne.s32.totalorder %s136, %s138
      %p145 = scmp.eq.s32.totalorder %s23, 1
      %p146 = por %p144, %p145
      %p147 = scmp.ne.s32.totalorder %s138, %s139
      %p148 = scmp.eq.s32.totalorder %s23, 0
      %p149 = por %p147, %p148
      %p150 = scmp.ne.s32.totalorder %s138, %s139
      %p151 = scmp.eq.s32.totalorder %s24, 1
      %p152 = por %p150, %p151
      %p154 = scmp.ne.s32.totalorder %s139, %s153
      %p155 = scmp.eq.s32.totalorder %s24, 0
      %p156 = por %p154, %p155
      %s158 = sadd.s32 %s157, 1
      %p161 = scmp.eq.s32.totalorder %s18, 1
      %p162 = scmp.ne.s32.totalorder %s157, %s159
      %p163 = scmp.eq.s32.totalorder %s18, 0
      %p164 = por %p162, %p163
      %p165 = scmp.ne.s32.totalorder %s157, %s159
      %p166 = scmp.eq.s32.totalorder %s23, 1
      %p167 = por %p165, %p166
      %p168 = scmp.ne.s32.totalorder %s159, %s160
      %p169 = scmp.eq.s32.totalorder %s23, 0
      %p170 = por %p168, %p169
      %p171 = scmp.ne.s32.totalorder %s159, %s160
      %p172 = scmp.eq.s32.totalorder %s24, 1
      %p173 = por %p171, %p172
      %p175 = scmp.ne.s32.totalorder %s160, %s174
      %p176 = scmp.eq.s32.totalorder %s24, 0
      %p177 = por %p175, %p176
      %s178 = ssub.s32 %s18, %s25
      %p179 = scmp.eq.s32.totalorder %s178, 0
      %s181 = sadd.s32 %s180, 1
      %s182 = scalar_select %p179, %s180, %s181
      %p185 = pneg %p179
      %p186 = scmp.eq.s32.totalorder %s18, 1
      %p187 = por %p185, %p186
      %p188 = scmp.ne.s32.totalorder %s180, %s183
      %p189 = scmp.eq.s32.totalorder %s18, 0
      %p190 = por %p188, %p189
      %p191 = scmp.ne.s32.totalorder %s180, %s183
      %p192 = scmp.eq.s32.totalorder %s23, 1
      %p193 = por %p191, %p192
      %p194 = scmp.ne.s32.totalorder %s183, %s184
      %p195 = scmp.eq.s32.totalorder %s23, 0
      %p196 = por %p194, %p195
      %p197 = scmp.ne.s32.totalorder %s183, %s184
      %p198 = scmp.eq.s32.totalorder %s24, 1
      %p199 = por %p197, %p198
      %p201 = scmp.ne.s32.totalorder %s184, %s200
      %p202 = scmp.eq.s32.totalorder %s24, 0
      %p203 = por %p201, %p202
      %p204 = scmp.le.s32.totalorder 1, %s18
      %p205 = scmp.lt.s32.totalorder %s18, 3
      %p206 = pnand %p204, %p205
      %p207 = pneg %p206
      // Predicated region
      $region9: #{tpu_custom_call.1} parent=5 // pred_check
        _
      $region10: #{tpu_custom_call.1} parent=5 // pred_check_branch
        %209 = sbr.rel (%p206) target = $region12
      $region11: #{tpu_custom_call.1} parent=5 // pred_region
        %s210 = ssub.s32 %s18, 1
        // Predicated region
        $region13: #{tpu_custom_call.1} parent=11 // pred_check
          %p211 = pneg %p65
        $region14: #{tpu_custom_call.1} parent=11 // pred_check_branch
          %213 = sbr.rel (%p211) target = $region16
        $region15: #{tpu_custom_call.1} parent=11 // pred_region
          _
        $region16: #{tpu_custom_call.1} parent=11 // pred_fallthru
          _
        // Predicated region
        $region17: #{tpu_custom_call.1} parent=11 // pred_check
          %p214 = pneg %p86
        $region18: #{tpu_custom_call.1} parent=11 // pred_check_branch
          %216 = sbr.rel (%p214) target = $region20
        $region19: #{tpu_custom_call.1} parent=11 // pred_region
          _
        $region20: #{tpu_custom_call.1} parent=11 // pred_fallthru
          _
        // Predicated region
        $region21: #{tpu_custom_call.1} parent=11 // pred_check
          %p217 = pneg %p107
        $region22: #{tpu_custom_call.1} parent=11 // pred_check_branch
          %219 = sbr.rel (%p217) target = $region24
        $region23: #{tpu_custom_call.1} parent=11 // pred_region
          _
        $region24: #{tpu_custom_call.1} parent=11 // pred_fallthru
          _
        // Predicated region
        $region25: #{tpu_custom_call.1} parent=11 // pred_check
          %p220 = pneg %p128
        $region26: #{tpu_custom_call.1} parent=11 // pred_check_branch
          %222 = sbr.rel (%p220) target = $region28
        $region27: #{tpu_custom_call.1} parent=11 // pred_region
          _
        $region28: #{tpu_custom_call.1} parent=11 // pred_fallthru
          _
        // Predicated region
        $region29: #{tpu_custom_call.1} parent=11 // pred_check
          %p223 = pneg %p149
        $region30: #{tpu_custom_call.1} parent=11 // pred_check_branch
          %225 = sbr.rel (%p223) target = $region32
        $region31: #{tpu_custom_call.1} parent=11 // pred_region
          _
        $region32: #{tpu_custom_call.1} parent=11 // pred_fallthru
          _
        // Predicated region
        $region33: #{tpu_custom_call.1} parent=11 // pred_check
          %p226 = pneg %p170
        $region34: #{tpu_custom_call.1} parent=11 // pred_check_branch
          %228 = sbr.rel (%p226) target = $region36
        $region35: #{tpu_custom_call.1} parent=11 // pred_region
          _
        $region36: #{tpu_custom_call.1} parent=11 // pred_fallthru
          _
      $region12: #{tpu_custom_call.1} parent=5 // pred_fallthru
        _
      %p229 = scmp.lt.s32.totalorder %s18, 2
      // Predicated region
      $region37: #{tpu_custom_call.1} parent=5 // pred_check
        %p230 = pneg %p229
      $region38: #{tpu_custom_call.1} parent=5 // pred_check_branch
        %232 = sbr.rel (%p230) target = $region40
      $region39: #{tpu_custom_call.1} parent=5 // pred_region
        // Predicated region
        $region41: #{tpu_custom_call.1} parent=39 // pred_check
          %p233 = pneg %p38
        $region42: #{tpu_custom_call.1} parent=39 // pred_check_branch
          %235 = sbr.rel (%p233) target = $region44
        $region43: #{tpu_custom_call.1} parent=39 // pred_region
          %s236 = smul.u32 32, %s18
          %p237 = scmp.lt.s32.totalorder %s236, 63
          %s238 = scalar_select %p237, %s236, 63
          %s239 = smul.addr %s238, 7
          %s240 = smul.addr %s239, 8
          %s241 = scalar_lea.vmem %s0, %s240
          %s242 = smul.u32 32, %s18
        $region44: #{tpu_custom_call.1} parent=39 // pred_fallthru
          _
      $region40: #{tpu_custom_call.1} parent=5 // pred_fallthru
        _
      %p243 = scmp.le.s32.totalorder 1, %s18
      %p244 = scmp.lt.s32.totalorder %s18, 3
      %p245 = pnand %p243, %p244
      %p246 = pneg %p245
      // Predicated region
      $region45: #{tpu_custom_call.1} parent=5 // pred_check
        _
      $region46: #{tpu_custom_call.1} parent=5 // pred_check_branch
        %248 = sbr.rel (%p245) target = $region48
      $region47: #{tpu_custom_call.1} parent=5 // pred_region
        %s249 = ssub.s32 %s18, 1
        %s250 = smul.u32 32, %s23
        %p251 = scmp.lt.s32.totalorder %s250, 63
        %s252 = scalar_select %p251, %s250, 63
        %s253 = smul.addr %s252, 7
        %s254 = smul.addr %s253, 8
        %s255 = scalar_lea.vmem %s0, %s254
        %p256 = pneg %p44
        %p257 = pneg %p41
        %p258 = pneg %p65
        %p259 = pneg %p62
        %p260 = pneg %p86
        %p261 = pneg %p83
        %p262 = pneg %p107
        %p263 = pneg %p104
        %p264 = pneg %p128
        %p265 = pneg %p125
        %p266 = pneg %p149
        %p267 = pneg %p146
        %p268 = pneg %p170
        %p269 = pneg %p167
        %p270 = pneg %p196
        %p271 = pneg %p193
        %s272 = sand.u32 %s183, 1
        %s273 = scalar_lea.sflag [#allocation4], %s272
        %s274 = sand.u32 %s183, 1
        %s275 = smul.addr %s274, 2
        %s276 = scalar_lea.vmem [#allocation3], %s275
        %s277 = smul.u32 32, %s23
        %p278 = scmp.lt.s32.totalorder %s277, 63
        %s279 = scalar_select %p278, %s277, 63
        %s280 = smul.addr %s279, 7
        %s281 = smul.addr %s280, 8
        %s282 = scalar_lea.vmem %s0, %s281
        %s283 = smul.u32 32, %s23
        %s284 = smul.u32 2, %s23
        %v286 = vld [vmem:[%s282] sm:$0xff]
        %v287 = vld [vmem:[%s282 + $0x8] sm:$0xff]
        %v288 = vld [vmem:[%s282 + $0x10] sm:$0xff]
        %v289 = vld [vmem:[%s282 + $0x18] sm:$0xff]
        %v290 = vld [vmem:[%s282 + $0x20] sm:$0xff]
        %v291 = vld [vmem:[%s282 + $0x28] sm:$0xff]
        %v292 = vld [vmem:[%s282 + $0x30] sm:$0xff]
        %v293 = vld [vmem:[%s282 + $0x38] sm:$0xff]
        %v294 = vld [vmem:[%s282 + $0x40] sm:$0xff]
        %v295 = vld [vmem:[%s282 + $0x48] sm:$0xff]
        %v296 = vld [vmem:[%s282 + $0x50] sm:$0xff]
        %v297 = vld [vmem:[%s282 + $0x58] sm:$0xff]
        %v298 = vld [vmem:[%s282 + $0x60] sm:$0xff]
        %v299 = vld [vmem:[%s282 + $0x68] sm:$0xff]
        %v300 = vld [vmem:[%s282 + $0x70] sm:$0xff]
        %v301 = vld [vmem:[%s282 + $0x78] sm:$0xff]
        %v302 = vld [vmem:[%s282 + $0x80] sm:$0xff]
        %v303 = vld [vmem:[%s282 + $0x88] sm:$0xff]
        %v304 = vld [vmem:[%s282 + $0x90] sm:$0xff]
        %v305 = vld [vmem:[%s282 + $0x98] sm:$0xff]
        %v306 = vld [vmem:[%s282 + $0xa0] sm:$0xff]
        %v307 = vld [vmem:[%s282 + $0xa8] sm:$0xff]
        %v308 = vld [vmem:[%s282 + $0xb0] sm:$0xff]
        %v309 = vld [vmem:[%s282 + $0xb8] sm:$0xff]
        %v310 = vld [vmem:[%s282 + $0xc0] sm:$0xff]
        %v311 = vld [vmem:[%s282 + $0xc8] sm:$0xff]
        %v312 = vld [vmem:[%s282 + $0xd0] sm:$0xff]
        %v313 = vld [vmem:[%s282 + $0xd8] sm:$0xff]
        %v314 = vld [vmem:[%s282 + $0xe0] sm:$0xff]
        %v315 = vld [vmem:[%s282 + $0xe8] sm:$0xff]
        %v316 = vld [vmem:[%s282 + $0xf0] sm:$0xff]
        %v317 = vld [vmem:[%s282 + $0xf8] sm:$0xff]
        %v318 = vld [vmem:[%s282 + $0x100] sm:$0xff]
        %v319 = vld [vmem:[%s282 + $0x108] sm:$0xff]
        %v320 = vld [vmem:[%s282 + $0x110] sm:$0xff]
        %v321 = vld [vmem:[%s282 + $0x118] sm:$0xff]
        %v322 = vld [vmem:[%s282 + $0x120] sm:$0xff]
        %v323 = vld [vmem:[%s282 + $0x128] sm:$0xff]
        %v324 = vld [vmem:[%s282 + $0x130] sm:$0xff]
        %v325 = vld [vmem:[%s282 + $0x138] sm:$0xff]
        %v326 = vld [vmem:[%s282 + $0x140] sm:$0xff]
        %v327 = vld [vmem:[%s282 + $0x148] sm:$0xff]
        %v328 = vld [vmem:[%s282 + $0x150] sm:$0xff]
        %v329 = vld [vmem:[%s282 + $0x158] sm:$0xff]
        %v330 = vld [vmem:[%s282 + $0x160] sm:$0xff]
        %v331 = vld [vmem:[%s282 + $0x168] sm:$0xff]
        %v332 = vld [vmem:[%s282 + $0x170] sm:$0xff]
        %v333 = vld [vmem:[%s282 + $0x178] sm:$0xff]
        %v334 = vld [vmem:[%s282 + $0x180] sm:$0xff]
        %v335 = vld [vmem:[%s282 + $0x188] sm:$0xff]
        %v336 = vld [vmem:[%s282 + $0x190] sm:$0xff]
        %v337 = vld [vmem:[%s282 + $0x198] sm:$0xff]
        %v338 = vld [vmem:[%s282 + $0x1a0] sm:$0xff]
        %v339 = vld [vmem:[%s282 + $0x1a8] sm:$0xff]
        %v340 = vld [vmem:[%s282 + $0x1b0] sm:$0xff]
        %v341 = vld [vmem:[%s282 + $0x1b8] sm:$0xff]
        %v342 = vld [vmem:[%s282 + $0x1c0] sm:$0xff]
        %v343 = vld [vmem:[%s282 + $0x1c8] sm:$0xff]
        %v344 = vld [vmem:[%s282 + $0x1d0] sm:$0xff]
        %v345 = vld [vmem:[%s282 + $0x1d8] sm:$0xff]
        %v346 = vld [vmem:[%s282 + $0x1e0] sm:$0xff]
        %v347 = vld [vmem:[%s282 + $0x1e8] sm:$0xff]
        %v348 = vld [vmem:[%s282 + $0x1f0] sm:$0xff]
        %v349 = vld [vmem:[%s282 + $0x1f8] sm:$0xff]
        %v350 = vld [vmem:[%s282 + $0x200] sm:$0xff]
        %v351 = vld [vmem:[%s282 + $0x208] sm:$0xff]
        %v352 = vld [vmem:[%s282 + $0x210] sm:$0xff]
        %v353 = vld [vmem:[%s282 + $0x218] sm:$0xff]
        %v354 = vld [vmem:[%s282 + $0x220] sm:$0xff]
        %v355 = vld [vmem:[%s282 + $0x228] sm:$0xff]
        %v356 = vld [vmem:[%s282 + $0x230] sm:$0xff]
        %v357 = vld [vmem:[%s282 + $0x238] sm:$0xff]
        %v358 = vld [vmem:[%s282 + $0x240] sm:$0xff]
        %v359 = vld [vmem:[%s282 + $0x248] sm:$0xff]
        %v360 = vld [vmem:[%s282 + $0x250] sm:$0xff]
        %v361 = vld [vmem:[%s282 + $0x258] sm:$0xff]
        %v362 = vld [vmem:[%s282 + $0x260] sm:$0xff]
        %v363 = vld [vmem:[%s282 + $0x268] sm:$0xff]
        %v364 = vld [vmem:[%s282 + $0x270] sm:$0xff]
        %v365 = vld [vmem:[%s282 + $0x278] sm:$0xff]
        %v366 = vld [vmem:[%s282 + $0x280] sm:$0xff]
        %v367 = vld [vmem:[%s282 + $0x288] sm:$0xff]
        %v368 = vld [vmem:[%s282 + $0x290] sm:$0xff]
        %v369 = vld [vmem:[%s282 + $0x298] sm:$0xff]
        %v370 = vld [vmem:[%s282 + $0x2a0] sm:$0xff]
        %v371 = vld [vmem:[%s282 + $0x2a8] sm:$0xff]
        %v372 = vld [vmem:[%s282 + $0x2b0] sm:$0xff]
        %v373 = vld [vmem:[%s282 + $0x2b8] sm:$0xff]
        %v374 = vld [vmem:[%s282 + $0x2c0] sm:$0xff]
        %v375 = vld [vmem:[%s282 + $0x2c8] sm:$0xff]
        %v376 = vld [vmem:[%s282 + $0x2d0] sm:$0xff]
        %v377 = vld [vmem:[%s282 + $0x2d8] sm:$0xff]
        %v378 = vld [vmem:[%s282 + $0x2e0] sm:$0xff]
        %v379 = vld [vmem:[%s282 + $0x2e8] sm:$0xff]
        %v380 = vld [vmem:[%s282 + $0x2f0] sm:$0xff]
        %v381 = vld [vmem:[%s282 + $0x2f8] sm:$0xff]
        %v382 = vld [vmem:[%s282 + $0x300] sm:$0xff]
        %v383 = vld [vmem:[%s282 + $0x308] sm:$0xff]
        %v384 = vld [vmem:[%s282 + $0x310] sm:$0xff]
        %v385 = vld [vmem:[%s282 + $0x318] sm:$0xff]
        %v386 = vld [vmem:[%s282 + $0x320] sm:$0xff]
        %v387 = vld [vmem:[%s282 + $0x328] sm:$0xff]
        %v388 = vld [vmem:[%s282 + $0x330] sm:$0xff]
        %v389 = vld [vmem:[%s282 + $0x338] sm:$0xff]
        %v390 = vld [vmem:[%s282 + $0x340] sm:$0xff]
        %v391 = vld [vmem:[%s282 + $0x348] sm:$0xff]
        %v392 = vld [vmem:[%s282 + $0x350] sm:$0xff]
        %v393 = vld [vmem:[%s282 + $0x358] sm:$0xff]
        %v394 = vld [vmem:[%s282 + $0x360] sm:$0xff]
        %v395 = vld [vmem:[%s282 + $0x368] sm:$0xff]
        %v396 = vld [vmem:[%s282 + $0x370] sm:$0xff]
        %v397 = vld [vmem:[%s282 + $0x378] sm:$0xff]
        %v398 = vld [vmem:[%s282 + $0x380] sm:$0xff]
        %v399 = vld [vmem:[%s282 + $0x388] sm:$0xff]
        %v400 = vld [vmem:[%s282 + $0x390] sm:$0xff]
        %v401 = vld [vmem:[%s282 + $0x398] sm:$0xff]
        %v402 = vld [vmem:[%s282 + $0x3a0] sm:$0xff]
        %v403 = vld [vmem:[%s282 + $0x3a8] sm:$0xff]
        %v404 = vld [vmem:[%s282 + $0x3b0] sm:$0xff]
        %v405 = vld [vmem:[%s282 + $0x3b8] sm:$0xff]
        %v406 = vld [vmem:[%s282 + $0x3c0] sm:$0xff]
        %v407 = vld [vmem:[%s282 + $0x3c8] sm:$0xff]
        %v408 = vld [vmem:[%s282 + $0x3d0] sm:$0xff]
        %v409 = vld [vmem:[%s282 + $0x3d8] sm:$0xff]
        %v410 = vld [vmem:[%s282 + $0x3e0] sm:$0xff]
        %v411 = vld [vmem:[%s282 + $0x3e8] sm:$0xff]
        %v412 = vld [vmem:[%s282 + $0x3f0] sm:$0xff]
        %v413 = vld [vmem:[%s282 + $0x3f8] sm:$0xff]
        %v414 = vld [vmem:[%s282 + $0x400] sm:$0xff]
        %v415 = vld [vmem:[%s282 + $0x408] sm:$0xff]
        %v416 = vld [vmem:[%s282 + $0x410] sm:$0xff]
        %v417 = vld [vmem:[%s282 + $0x418] sm:$0xff]
        %v418 = vld [vmem:[%s282 + $0x420] sm:$0xff]
        %v419 = vld [vmem:[%s282 + $0x428] sm:$0xff]
        %v420 = vld [vmem:[%s282 + $0x430] sm:$0xff]
        %v421 = vld [vmem:[%s282 + $0x438] sm:$0xff]
        %v422 = vld [vmem:[%s282 + $0x440] sm:$0xff]
        %v423 = vld [vmem:[%s282 + $0x448] sm:$0xff]
        %v424 = vld [vmem:[%s282 + $0x450] sm:$0xff]
        %v425 = vld [vmem:[%s282 + $0x458] sm:$0xff]
        %v426 = vld [vmem:[%s282 + $0x460] sm:$0xff]
        %v427 = vld [vmem:[%s282 + $0x468] sm:$0xff]
        %v428 = vld [vmem:[%s282 + $0x470] sm:$0xff]
        %v429 = vld [vmem:[%s282 + $0x478] sm:$0xff]
        %v430 = vld [vmem:[%s282 + $0x480] sm:$0xff]
        %v431 = vld [vmem:[%s282 + $0x488] sm:$0xff]
        %v432 = vld [vmem:[%s282 + $0x490] sm:$0xff]
        %v433 = vld [vmem:[%s282 + $0x498] sm:$0xff]
        %v434 = vld [vmem:[%s282 + $0x4a0] sm:$0xff]
        %v435 = vld [vmem:[%s282 + $0x4a8] sm:$0xff]
        %v436 = vld [vmem:[%s282 + $0x4b0] sm:$0xff]
        %v437 = vld [vmem:[%s282 + $0x4b8] sm:$0xff]
        %v438 = vld [vmem:[%s282 + $0x4c0] sm:$0xff]
        %v439 = vld [vmem:[%s282 + $0x4c8] sm:$0xff]
        %v440 = vld [vmem:[%s282 + $0x4d0] sm:$0xff]
        %v441 = vld [vmem:[%s282 + $0x4d8] sm:$0xff]
        %v442 = vld [vmem:[%s282 + $0x4e0] sm:$0xff]
        %v443 = vld [vmem:[%s282 + $0x4e8] sm:$0xff]
        %v444 = vld [vmem:[%s282 + $0x4f0] sm:$0xff]
        %v445 = vld [vmem:[%s282 + $0x4f8] sm:$0xff]
        %v446 = vld [vmem:[%s282 + $0x500] sm:$0xff]
        %v447 = vld [vmem:[%s282 + $0x508] sm:$0xff]
        %v448 = vld [vmem:[%s282 + $0x510] sm:$0xff]
        %v449 = vld [vmem:[%s282 + $0x518] sm:$0xff]
        %v450 = vld [vmem:[%s282 + $0x520] sm:$0xff]
        %v451 = vld [vmem:[%s282 + $0x528] sm:$0xff]
        %v452 = vld [vmem:[%s282 + $0x530] sm:$0xff]
        %v453 = vld [vmem:[%s282 + $0x538] sm:$0xff]
        %v454 = vld [vmem:[%s282 + $0x540] sm:$0xff]
        %v455 = vld [vmem:[%s282 + $0x548] sm:$0xff]
        %v456 = vld [vmem:[%s282 + $0x550] sm:$0xff]
        %v457 = vld [vmem:[%s282 + $0x558] sm:$0xff]
        %v458 = vld [vmem:[%s282 + $0x560] sm:$0xff]
        %v459 = vld [vmem:[%s282 + $0x568] sm:$0xff]
        %v460 = vld [vmem:[%s282 + $0x570] sm:$0xff]
        %v461 = vld [vmem:[%s282 + $0x578] sm:$0xff]
        %v462 = vld [vmem:[%s282 + $0x580] sm:$0xff]
        %v463 = vld [vmem:[%s282 + $0x588] sm:$0xff]
        %v464 = vld [vmem:[%s282 + $0x590] sm:$0xff]
        %v465 = vld [vmem:[%s282 + $0x598] sm:$0xff]
        %v466 = vld [vmem:[%s282 + $0x5a0] sm:$0xff]
        %v467 = vld [vmem:[%s282 + $0x5a8] sm:$0xff]
        %v468 = vld [vmem:[%s282 + $0x5b0] sm:$0xff]
        %v469 = vld [vmem:[%s282 + $0x5b8] sm:$0xff]
        %v470 = vld [vmem:[%s282 + $0x5c0] sm:$0xff]
        %v471 = vld [vmem:[%s282 + $0x5c8] sm:$0xff]
        %v472 = vld [vmem:[%s282 + $0x5d0] sm:$0xff]
        %v473 = vld [vmem:[%s282 + $0x5d8] sm:$0xff]
        %v474 = vld [vmem:[%s282 + $0x5e0] sm:$0xff]
        %v475 = vld [vmem:[%s282 + $0x5e8] sm:$0xff]
        %v476 = vld [vmem:[%s282 + $0x5f0] sm:$0xff]
        %v477 = vld [vmem:[%s282 + $0x5f8] sm:$0xff]
        %v478 = vld [vmem:[%s282 + $0x600] sm:$0xff]
        %v479 = vld [vmem:[%s282 + $0x608] sm:$0xff]
        %v480 = vld [vmem:[%s282 + $0x610] sm:$0xff]
        %v481 = vld [vmem:[%s282 + $0x618] sm:$0xff]
        %v482 = vld [vmem:[%s282 + $0x620] sm:$0xff]
        %v483 = vld [vmem:[%s282 + $0x628] sm:$0xff]
        %v484 = vld [vmem:[%s282 + $0x630] sm:$0xff]
        %v485 = vld [vmem:[%s282 + $0x638] sm:$0xff]
        %v486 = vld [vmem:[%s282 + $0x640] sm:$0xff]
        %v487 = vld [vmem:[%s282 + $0x648] sm:$0xff]
        %v488 = vld [vmem:[%s282 + $0x650] sm:$0xff]
        %v489 = vld [vmem:[%s282 + $0x658] sm:$0xff]
        %v490 = vld [vmem:[%s282 + $0x660] sm:$0xff]
        %v491 = vld [vmem:[%s282 + $0x668] sm:$0xff]
        %v492 = vld [vmem:[%s282 + $0x670] sm:$0xff]
        %v493 = vld [vmem:[%s282 + $0x678] sm:$0xff]
        %v494 = vld [vmem:[%s282 + $0x680] sm:$0xff]
        %v495 = vld [vmem:[%s282 + $0x688] sm:$0xff]
        %v496 = vld [vmem:[%s282 + $0x690] sm:$0xff]
        %v497 = vld [vmem:[%s282 + $0x698] sm:$0xff]
        %v498 = vld [vmem:[%s282 + $0x6a0] sm:$0xff]
        %v499 = vld [vmem:[%s282 + $0x6a8] sm:$0xff]
        %v500 = vld [vmem:[%s282 + $0x6b0] sm:$0xff]
        %v501 = vld [vmem:[%s282 + $0x6b8] sm:$0xff]
        %v502 = vld [vmem:[%s282 + $0x6c0] sm:$0xff]
        %v503 = vld [vmem:[%s282 + $0x6c8] sm:$0xff]
        %v504 = vld [vmem:[%s282 + $0x6d0] sm:$0xff]
        %v505 = vld [vmem:[%s282 + $0x6d8] sm:$0xff]
        %v506 = vld [vmem:[%s282 + $0x6e0] sm:$0xff]
        %v507 = vld [vmem:[%s282 + $0x6e8] sm:$0xff]
        %v508 = vld [vmem:[%s282 + $0x6f0] sm:$0xff]
        %v509 = vld [vmem:[%s282 + $0x6f8] sm:$0xff]
        %v510 = vpack.c.bf16 %v293, %v286
        %v511 = vpack.c.bf16 %v294, %v287
        %v512 = vpack.c.bf16 %v295, %v288
        %v513 = vpack.c.bf16 %v296, %v289
        %v514 = vpack.c.bf16 %v297, %v290
        %v515 = vpack.c.bf16 %v298, %v291
        %v516 = vpack.c.bf16 %v299, %v292
        %v517 = vpack.c.bf16 %v307, %v300
        %v518 = vpack.c.bf16 %v308, %v301
        %v519 = vpack.c.bf16 %v309, %v302
        %v520 = vpack.c.bf16 %v310, %v303
        %v521 = vpack.c.bf16 %v311, %v304
        %v522 = vpack.c.bf16 %v312, %v305
        %v523 = vpack.c.bf16 %v313, %v306
        %v524 = vpack.c.bf16 %v321, %v314
        %v525 = vpack.c.bf16 %v322, %v315
        %v526 = vpack.c.bf16 %v323, %v316
        %v527 = vpack.c.bf16 %v324, %v317
        %v528 = vpack.c.bf16 %v325, %v318
        %v529 = vpack.c.bf16 %v326, %v319
        %v530 = vpack.c.bf16 %v327, %v320
        %v531 = vpack.c.bf16 %v335, %v328
        %v532 = vpack.c.bf16 %v336, %v329
        %v533 = vpack.c.bf16 %v337, %v330
        %v534 = vpack.c.bf16 %v338, %v331
        %v535 = vpack.c.bf16 %v339, %v332
        %v536 = vpack.c.bf16 %v340, %v333
        %v537 = vpack.c.bf16 %v341, %v334
        %v538 = vpack.c.bf16 %v349, %v342
        %v539 = vpack.c.bf16 %v350, %v343
        %v540 = vpack.c.bf16 %v351, %v344
        %v541 = vpack.c.bf16 %v352, %v345
        %v542 = vpack.c.bf16 %v353, %v346
        %v543 = vpack.c.bf16 %v354, %v347
        %v544 = vpack.c.bf16 %v355, %v348
        %v545 = vpack.c.bf16 %v363, %v356
        %v546 = vpack.c.bf16 %v364, %v357
        %v547 = vpack.c.bf16 %v365, %v358
        %v548 = vpack.c.bf16 %v366, %v359
        %v549 = vpack.c.bf16 %v367, %v360
        %v550 = vpack.c.bf16 %v368, %v361
        %v551 = vpack.c.bf16 %v369, %v362
        %v552 = vpack.c.bf16 %v377, %v370
        %v553 = vpack.c.bf16 %v378, %v371
        %v554 = vpack.c.bf16 %v379, %v372
        %v555 = vpack.c.bf16 %v380, %v373
        %v556 = vpack.c.bf16 %v381, %v374
        %v557 = vpack.c.bf16 %v382, %v375
        %v558 = vpack.c.bf16 %v383, %v376
        %v559 = vpack.c.bf16 %v391, %v384
        %v560 = vpack.c.bf16 %v392, %v385
        %v561 = vpack.c.bf16 %v393, %v386
        %v562 = vpack.c.bf16 %v394, %v387
        %v563 = vpack.c.bf16 %v395, %v388
        %v564 = vpack.c.bf16 %v396, %v389
        %v565 = vpack.c.bf16 %v397, %v390
        %v566 = vpack.c.bf16 %v405, %v398
        %v567 = vpack.c.bf16 %v406, %v399
        %v568 = vpack.c.bf16 %v407, %v400
        %v569 = vpack.c.bf16 %v408, %v401
        %v570 = vpack.c.bf16 %v409, %v402
        %v571 = vpack.c.bf16 %v410, %v403
        %v572 = vpack.c.bf16 %v411, %v404
        %v573 = vpack.c.bf16 %v419, %v412
        %v574 = vpack.c.bf16 %v420, %v413
        %v575 = vpack.c.bf16 %v421, %v414
        %v576 = vpack.c.bf16 %v422, %v415
        %v577 = vpack.c.bf16 %v423, %v416
        %v578 = vpack.c.bf16 %v424, %v417
        %v579 = vpack.c.bf16 %v425, %v418
        %v580 = vpack.c.bf16 %v433, %v426
        %v581 = vpack.c.bf16 %v434, %v427
        %v582 = vpack.c.bf16 %v435, %v428
        %v583 = vpack.c.bf16 %v436, %v429
        %v584 = vpack.c.bf16 %v437, %v430
        %v585 = vpack.c.bf16 %v438, %v431
        %v586 = vpack.c.bf16 %v439, %v432
        %v587 = vpack.c.bf16 %v447, %v440
        %v588 = vpack.c.bf16 %v448, %v441
        %v589 = vpack.c.bf16 %v449, %v442
        %v590 = vpack.c.bf16 %v450, %v443
        %v591 = vpack.c.bf16 %v451, %v444
        %v592 = vpack.c.bf16 %v452, %v445
        %v593 = vpack.c.bf16 %v453, %v446
        %v594 = vpack.c.bf16 %v461, %v454
        %v595 = vpack.c.bf16 %v462, %v455
        %v596 = vpack.c.bf16 %v463, %v456
        %v597 = vpack.c.bf16 %v464, %v457
        %v598 = vpack.c.bf16 %v465, %v458
        %v599 = vpack.c.bf16 %v466, %v459
        %v600 = vpack.c.bf16 %v467, %v460
        %v601 = vpack.c.bf16 %v475, %v468
        %v602 = vpack.c.bf16 %v476, %v469
        %v603 = vpack.c.bf16 %v477, %v470
        %v604 = vpack.c.bf16 %v478, %v471
        %v605 = vpack.c.bf16 %v479, %v472
        %v606 = vpack.c.bf16 %v480, %v473
        %v607 = vpack.c.bf16 %v481, %v474
        %v608 = vpack.c.bf16 %v489, %v482
        %v609 = vpack.c.bf16 %v490, %v483
        %v610 = vpack.c.bf16 %v491, %v484
        %v611 = vpack.c.bf16 %v492, %v485
        %v612 = vpack.c.bf16 %v493, %v486
        %v613 = vpack.c.bf16 %v494, %v487
        %v614 = vpack.c.bf16 %v495, %v488
        %v615 = vpack.c.bf16 %v503, %v496
        %v616 = vpack.c.bf16 %v504, %v497
        %v617 = vpack.c.bf16 %v505, %v498
        %v618 = vpack.c.bf16 %v506, %v499
        %v619 = vpack.c.bf16 %v507, %v500
        %v620 = vpack.c.bf16 %v508, %v501
        %v621 = vpack.c.bf16 %v509, %v502
        %v622 = vld [vmem:[%s1] sm:$0xf]
        %v623 = vld [vmem:[%s1 + $0x4] sm:$0xf]
        %v624 = vld [vmem:[%s1 + $0x8] sm:$0xf]
        %v625 = vld [vmem:[%s1 + $0xc] sm:$0xf]
        %v626 = vld [vmem:[%s1 + $0x10] sm:$0xf]
        %v627 = vld [vmem:[%s1 + $0x14] sm:$0xf]
        %v628 = vld [vmem:[%s1 + $0x18] sm:$0xf]
        %v629 = vld [vmem:[%s1 + $0x1c] sm:$0xf]
        %v630 = vld [vmem:[%s1 + $0x20] sm:$0xf]
        %v631 = vld [vmem:[%s1 + $0x24] sm:$0xf]
        %v632 = vld [vmem:[%s1 + $0x28] sm:$0xf]
        %v633 = vld [vmem:[%s1 + $0x2c] sm:$0xf]
        %v634 = vld [vmem:[%s1 + $0x30] sm:$0xf]
        %v635 = vld [vmem:[%s1 + $0x34] sm:$0xf]
        %v636 = vld [vmem:[%s1 + $0x38] sm:$0xf]
        %v637 = vld [vmem:[%s1 + $0x3c] sm:$0xf]
        %v638 = vld [vmem:[%s1 + $0x40] sm:$0xf]
        %v639 = vld [vmem:[%s1 + $0x44] sm:$0xf]
        %v640 = vld [vmem:[%s1 + $0x48] sm:$0xf]
        %v641 = vld [vmem:[%s1 + $0x4c] sm:$0xf]
        %v642 = vld [vmem:[%s1 + $0x50] sm:$0xf]
        %v643 = vld [vmem:[%s1 + $0x54] sm:$0xf]
        %v644 = vld [vmem:[%s1 + $0x58] sm:$0xf]
        %v645 = vld [vmem:[%s1 + $0x5c] sm:$0xf]
        %v646 = vld [vmem:[%s1 + $0x60] sm:$0xf]
        %v647 = vld [vmem:[%s1 + $0x64] sm:$0xf]
        %v648 = vld [vmem:[%s1 + $0x68] sm:$0xf]
        %v649 = vld [vmem:[%s1 + $0x6c] sm:$0xf]
        %v650 = vld [vmem:[%s1 + $0x70] sm:$0xf]
        %v651 = vld [vmem:[%s1 + $0x74] sm:$0xf]
        %v652 = vld [vmem:[%s1 + $0x78] sm:$0xf]
        %v653 = vld [vmem:[%s1 + $0x7c] sm:$0xf]
        %v654 = vld [vmem:[%s1 + $0x80] sm:$0xf]
        %v655 = vld [vmem:[%s1 + $0x84] sm:$0xf]
        %v656 = vld [vmem:[%s1 + $0x88] sm:$0xf]
        %v657 = vld [vmem:[%s1 + $0x8c] sm:$0xf]
        %v658 = vld [vmem:[%s1 + $0x90] sm:$0xf]
        %v659 = vld [vmem:[%s1 + $0x94] sm:$0xf]
        %v660 = vld [vmem:[%s1 + $0x98] sm:$0xf]
        %v661 = vld [vmem:[%s1 + $0x9c] sm:$0xf]
        %v662 = vld [vmem:[%s1 + $0xa0] sm:$0xf]
        %v663 = vld [vmem:[%s1 + $0xa4] sm:$0xf]
        %v664 = vld [vmem:[%s1 + $0xa8] sm:$0xf]
        %v665 = vld [vmem:[%s1 + $0xac] sm:$0xf]
        %v666 = vld [vmem:[%s1 + $0xb0] sm:$0xf]
        %v667 = vld [vmem:[%s1 + $0xb4] sm:$0xf]
        %v668 = vld [vmem:[%s1 + $0xb8] sm:$0xf]
        %v669 = vld [vmem:[%s1 + $0xbc] sm:$0xf]
        %v670 = vld [vmem:[%s1 + $0xc0] sm:$0xf]
        %v671 = vld [vmem:[%s1 + $0xc4] sm:$0xf]
        %v672 = vld [vmem:[%s1 + $0xc8] sm:$0xf]
        %v673 = vld [vmem:[%s1 + $0xcc] sm:$0xf]
        %v674 = vld [vmem:[%s1 + $0xd0] sm:$0xf]
        %v675 = vld [vmem:[%s1 + $0xd4] sm:$0xf]
        %v676 = vld [vmem:[%s1 + $0xd8] sm:$0xf]
        %v677 = vld [vmem:[%s1 + $0xdc] sm:$0xf]
        %v678 = vld [vmem:[%s1 + $0xe0] sm:$0xf]
        %v679 = vld [vmem:[%s1 + $0xe4] sm:$0xf]
        %v680 = vld [vmem:[%s1 + $0xe8] sm:$0xf]
        %v681 = vld [vmem:[%s1 + $0xec] sm:$0xf]
        %v682 = vld [vmem:[%s1 + $0xf0] sm:$0xf]
        %v683 = vld [vmem:[%s1 + $0xf4] sm:$0xf]
        %v684 = vld [vmem:[%s1 + $0xf8] sm:$0xf]
        %v685 = vld [vmem:[%s1 + $0xfc] sm:$0xf]
        %v686 = vld [vmem:[%s1 + $0x100] sm:$0xf]
        %v687 = vld [vmem:[%s1 + $0x104] sm:$0xf]
        %v688 = vld [vmem:[%s1 + $0x108] sm:$0xf]
        %v689 = vld [vmem:[%s1 + $0x10c] sm:$0xf]
        %v690 = vld [vmem:[%s1 + $0x110] sm:$0xf]
        %v691 = vld [vmem:[%s1 + $0x114] sm:$0xf]
        %v692 = vld [vmem:[%s1 + $0x118] sm:$0xf]
        %v693 = vld [vmem:[%s1 + $0x11c] sm:$0xf]
        %v694 = vld [vmem:[%s1 + $0x120] sm:$0xf]
        %v695 = vld [vmem:[%s1 + $0x124] sm:$0xf]
        %v696 = vld [vmem:[%s1 + $0x128] sm:$0xf]
        %v697 = vld [vmem:[%s1 + $0x12c] sm:$0xf]
        %v698 = vld [vmem:[%s1 + $0x130] sm:$0xf]
        %v699 = vld [vmem:[%s1 + $0x134] sm:$0xf]
        %v700 = vld [vmem:[%s1 + $0x138] sm:$0xf]
        %v701 = vld [vmem:[%s1 + $0x13c] sm:$0xf]
        %v702 = vld [vmem:[%s1 + $0x140] sm:$0xf]
        %v703 = vld [vmem:[%s1 + $0x144] sm:$0xf]
        %v704 = vld [vmem:[%s1 + $0x148] sm:$0xf]
        %v705 = vld [vmem:[%s1 + $0x14c] sm:$0xf]
        %v706 = vld [vmem:[%s1 + $0x150] sm:$0xf]
        %v707 = vld [vmem:[%s1 + $0x154] sm:$0xf]
        %v708 = vld [vmem:[%s1 + $0x158] sm:$0xf]
        %v709 = vld [vmem:[%s1 + $0x15c] sm:$0xf]
        %v710 = vld [vmem:[%s1 + $0x160] sm:$0xf]
        %v711 = vld [vmem:[%s1 + $0x164] sm:$0xf]
        %v712 = vld [vmem:[%s1 + $0x168] sm:$0xf]
        %v713 = vld [vmem:[%s1 + $0x16c] sm:$0xf]
        %v714 = vld [vmem:[%s1 + $0x170] sm:$0xf]
        %v715 = vld [vmem:[%s1 + $0x174] sm:$0xf]
        %v716 = vld [vmem:[%s1 + $0x178] sm:$0xf]
        %v717 = vld [vmem:[%s1 + $0x17c] sm:$0xf]
        %v718 = vld [vmem:[%s1 + $0x180] sm:$0xf]
        %v719 = vld [vmem:[%s2] sm:$0x1]
        %v721 = vlaneseq
        %v722 = vshrl.u32 %v721, 7
        %v723 = vsub.s32 0, %v722
        %v724 = vrot.slane %v719, %v723
        %v823 = vunpack.c.l.b16 %v622
        %v824 = vunpack.c.l.b16 %v623
        %v825 = vunpack.c.l.b16 %v624
        %v826 = vunpack.c.l.b16 %v625
        %v827 = vunpack.c.l.b16 %v626
        %v828 = vunpack.c.l.b16 %v627
        %v829 = vunpack.c.l.b16 %v628
        %v830 = vunpack.c.l.b16 %v629
        %v831 = vunpack.c.l.b16 %v630
        %v832 = vunpack.c.l.b16 %v631
        %v833 = vunpack.c.l.b16 %v632
        %v834 = vunpack.c.l.b16 %v633
        %v835 = vunpack.c.l.b16 %v634
        %v836 = vunpack.c.l.b16 %v635
        %v837 = vunpack.c.l.b16 %v636
        %v838 = vunpack.c.l.b16 %v637
        %v839 = vunpack.c.l.b16 %v638
        %v840 = vunpack.c.l.b16 %v639
        %v841 = vunpack.c.l.b16 %v640
        %v842 = vunpack.c.l.b16 %v641
        %v843 = vunpack.c.l.b16 %v642
        %v844 = vunpack.c.l.b16 %v643
        %v845 = vunpack.c.l.b16 %v644
        %v846 = vunpack.c.l.b16 %v645
        %v847 = vunpack.c.l.b16 %v646
        %v848 = vunpack.c.l.b16 %v647
        %v849 = vunpack.c.l.b16 %v648
        %v850 = vunpack.c.l.b16 %v649
        %v851 = vunpack.c.l.b16 %v650
        %v852 = vunpack.c.l.b16 %v651
        %v853 = vunpack.c.l.b16 %v652
        %v854 = vunpack.c.l.b16 %v653
        %v855 = vunpack.c.l.b16 %v654
        %v856 = vunpack.c.l.b16 %v655
        %v857 = vunpack.c.l.b16 %v656
        %v858 = vunpack.c.l.b16 %v657
        %v859 = vunpack.c.l.b16 %v658
        %v860 = vunpack.c.l.b16 %v659
        %v861 = vunpack.c.l.b16 %v660
        %v862 = vunpack.c.l.b16 %v661
        %v863 = vunpack.c.l.b16 %v662
        %v864 = vunpack.c.l.b16 %v663
        %v865 = vunpack.c.l.b16 %v664
        %v866 = vunpack.c.l.b16 %v665
        %v867 = vunpack.c.l.b16 %v666
        %v868 = vunpack.c.l.b16 %v667
        %v869 = vunpack.c.l.b16 %v668
        %v870 = vunpack.c.l.b16 %v669
        %v871 = vunpack.c.l.b16 %v670
        %v872 = vunpack.c.l.b16 %v671
        %v873 = vunpack.c.l.b16 %v672
        %v874 = vunpack.c.l.b16 %v673
        %v875 = vunpack.c.l.b16 %v674
        %v876 = vunpack.c.l.b16 %v675
        %v877 = vunpack.c.l.b16 %v676
        %v878 = vunpack.c.l.b16 %v677
        %v879 = vunpack.c.l.b16 %v678
        %v880 = vunpack.c.l.b16 %v679
        %v881 = vunpack.c.l.b16 %v680
        %v882 = vunpack.c.l.b16 %v681
        %v883 = vunpack.c.l.b16 %v682
        %v884 = vunpack.c.l.b16 %v683
        %v885 = vunpack.c.l.b16 %v684
        %v886 = vunpack.c.l.b16 %v685
        %v887 = vunpack.c.l.b16 %v686
        %v888 = vunpack.c.l.b16 %v687
        %v889 = vunpack.c.l.b16 %v688
        %v890 = vunpack.c.l.b16 %v689
        %v891 = vunpack.c.l.b16 %v690
        %v892 = vunpack.c.l.b16 %v691
        %v893 = vunpack.c.l.b16 %v692
        %v894 = vunpack.c.l.b16 %v693
        %v895 = vunpack.c.l.b16 %v694
        %v896 = vunpack.c.l.b16 %v695
        %v897 = vunpack.c.l.b16 %v696
        %v898 = vunpack.c.l.b16 %v697
        %v899 = vunpack.c.l.b16 %v698
        %v900 = vunpack.c.l.b16 %v699
        %v901 = vunpack.c.l.b16 %v700
        %v902 = vunpack.c.l.b16 %v701
        %v903 = vunpack.c.l.b16 %v702
        %v904 = vunpack.c.l.b16 %v703
        %v905 = vunpack.c.l.b16 %v704
        %v906 = vunpack.c.l.b16 %v705
        %v907 = vunpack.c.l.b16 %v706
        %v908 = vunpack.c.l.b16 %v707
        %v909 = vunpack.c.l.b16 %v708
        %v910 = vunpack.c.l.b16 %v709
        %v911 = vunpack.c.l.b16 %v710
        %v912 = vunpack.c.l.b16 %v711
        %v913 = vunpack.c.l.b16 %v712
        %v914 = vunpack.c.l.b16 %v713
        %v915 = vunpack.c.l.b16 %v714
        %v916 = vunpack.c.l.b16 %v715
        %v917 = vunpack.c.l.b16 %v716
        %v918 = vunpack.c.l.b16 %v717
        %v919 = vunpack.c.l.b16 %v718
        %v920 = vpack.c.b16 %v824, %v823
        %v921 = vpack.c.b16 %v826, %v825
        %v922 = vpack.c.b16 %v828, %v827
        %v923 = vpack.c.b16 %v830, %v829
        %v924 = vpack.c.b16 %v832, %v831
        %v925 = vpack.c.b16 %v834, %v833
        %v926 = vpack.c.b16 %v836, %v835
        %v927 = vpack.c.b16 %v838, %v837
        %v928 = vpack.c.b16 %v840, %v839
        %v929 = vpack.c.b16 %v842, %v841
        %v930 = vpack.c.b16 %v844, %v843
        %v931 = vpack.c.b16 %v846, %v845
        %v932 = vpack.c.b16 %v848, %v847
        %v933 = vpack.c.b16 %v850, %v849
        %v934 = vpack.c.b16 %v852, %v851
        %v935 = vpack.c.b16 %v854, %v853
        %v936 = vpack.c.b16 %v856, %v855
        %v937 = vpack.c.b16 %v858, %v857
        %v938 = vpack.c.b16 %v860, %v859
        %v939 = vpack.c.b16 %v862, %v861
        %v940 = vpack.c.b16 %v864, %v863
        %v941 = vpack.c.b16 %v866, %v865
        %v942 = vpack.c.b16 %v868, %v867
        %v943 = vpack.c.b16 %v870, %v869
        %v944 = vpack.c.b16 %v872, %v871
        %v945 = vpack.c.b16 %v874, %v873
        %v946 = vpack.c.b16 %v876, %v875
        %v947 = vpack.c.b16 %v878, %v877
        %v948 = vpack.c.b16 %v880, %v879
        %v949 = vpack.c.b16 %v882, %v881
        %v950 = vpack.c.b16 %v884, %v883
        %v951 = vpack.c.b16 %v886, %v885
        %v952 = vpack.c.b16 %v888, %v887
        %v953 = vpack.c.b16 %v890, %v889
        %v954 = vpack.c.b16 %v892, %v891
        %v955 = vpack.c.b16 %v894, %v893
        %v956 = vpack.c.b16 %v896, %v895
        %v957 = vpack.c.b16 %v898, %v897
        %v958 = vpack.c.b16 %v900, %v899
        %v959 = vpack.c.b16 %v902, %v901
        %v960 = vpack.c.b16 %v904, %v903
        %v961 = vpack.c.b16 %v906, %v905
        %v962 = vpack.c.b16 %v908, %v907
        %v963 = vpack.c.b16 %v910, %v909
        %v964 = vpack.c.b16 %v912, %v911
        %v965 = vpack.c.b16 %v914, %v913
        %v966 = vpack.c.b16 %v916, %v915
        %v967 = vpack.c.b16 %v918, %v917
        %v968 = vpack.c.b16 %v919, %v919
        %vm1017 = vcmask 64512
        %v1019 = vsel %vm1017, %v516, 0
        %v1022 = vsel %vm1017, %v523, 0
        %v1025 = vsel %vm1017, %v530, 0
        %v1028 = vsel %vm1017, %v537, 0
        %v1031 = vsel %vm1017, %v544, 0
        %v1034 = vsel %vm1017, %v551, 0
        %v1037 = vsel %vm1017, %v558, 0
        %v1040 = vsel %vm1017, %v565, 0
        %v1043 = vsel %vm1017, %v572, 0
        %v1046 = vsel %vm1017, %v579, 0
        %v1049 = vsel %vm1017, %v586, 0
        %v1052 = vsel %vm1017, %v593, 0
        %v1055 = vsel %vm1017, %v600, 0
        %v1058 = vsel %vm1017, %v607, 0
        %v1061 = vsel %vm1017, %v614, 0
        %v1064 = vsel %vm1017, %v621, 0
        %vm1066 = vcmask 1043456
        %v1068 = vsel %vm1066, %v968, 0
        %1070 = vmatprep.subr.bf16.mxu0 0
        %1071 = vmatpush1.bf16.msra.mxu0 %v920
        %1072 = vmatprep.subr.bf16.mxu0 0
        %1073 = vmatpush1.bf16.msra.mxu0 %v921
        %1074 = vmatprep.subr.bf16.mxu0 0
        %1075 = vmatpush1.bf16.msra.mxu0 %v922
        %1076 = vmatprep.subr.bf16.mxu0 0
        %1077 = vmatpush1.bf16.msra.mxu0 %v923
        %1078 = vmatprep.subr.bf16.mxu0 0
        %1079 = vmatpush1.bf16.msra.mxu0 %v924
        %1080 = vmatprep.subr.bf16.mxu0 0
        %1081 = vmatpush1.bf16.msra.mxu0 %v925
        %1082 = vmatprep.subr.bf16.mxu0 0
        %1083 = vmatpush1.bf16.msra.mxu0 %v926
        %1084 = vmatprep.subr.bf16.mxu0 0
        %1085 = vmatpush1.bf16.msra.mxu0 %v927
        %1086 = vmatprep.subr.bf16.mxu0 0
        %1087 = vmatpush1.bf16.msra.mxu0 %v928
        %1088 = vmatprep.subr.bf16.mxu0 0
        %1089 = vmatpush1.bf16.msra.mxu0 %v929
        %1090 = vmatprep.subr.bf16.mxu0 0
        %1091 = vmatpush1.bf16.msra.mxu0 %v930
        %1092 = vmatprep.subr.bf16.mxu0 0
        %1093 = vmatpush1.bf16.msra.mxu0 %v931
        %1094 = vmatprep.subr.bf16.mxu0 0
        %1095 = vmatpush1.bf16.msra.mxu0 %v932
        %1096 = vmatprep.subr.bf16.mxu0 0
        %1097 = vmatpush1.bf16.msra.mxu0 %v933
        %1098 = vmatprep.subr.bf16.mxu0 0
        %1099 = vmatpush1.bf16.msra.mxu0 %v934
        %1100 = vmatprep.subr.bf16.mxu0 0
        %1101 = vmatpush1.bf16.msra.mxu0 %v935
        %1102 = vmatprep.mubr.bf16.mxu0 %v511
        %1103 = vmatmul.mubr.bf16.gmra.mrb[0].mxu0 %v510
        %v1104 = vpop.f32.mrb[0].mxu0
        %v1105 = vadd.f32 %v724, %v1104
        %v1106 = vpop.f32.mrb[0].mxu0
        %v1107 = vpop.f32.mrb[0].mxu0
        %v1108 = vadd.f32 %v724, %v1107
        %v1109 = vpop.f32.mrb[0].mxu0
        %1110 = vmatprep.mubr.bf16.mxu0 %v518
        %1111 = vmatmul.mubr.bf16.gmra.mrb[0].mxu0 %v517
        %v1112 = vpop.f32.mrb[0].mxu0
        %v1113 = vadd.f32 %v724, %v1112
        %v1114 = vpop.f32.mrb[0].mxu0
        %v1115 = vpop.f32.mrb[0].mxu0
        %v1116 = vadd.f32 %v724, %v1115
        %v1117 = vpop.f32.mrb[0].mxu0
        %1118 = vmatprep.mubr.bf16.mxu0 %v525
        %1119 = vmatmul.mubr.bf16.gmra.mrb[0].mxu0 %v524
        %v1120 = vpop.f32.mrb[0].mxu0
        %v1121 = vadd.f32 %v724, %v1120
        %v1122 = vpop.f32.mrb[0].mxu0
        %v1123 = vpop.f32.mrb[0].mxu0
        %v1124 = vadd.f32 %v724, %v1123
        %v1125 = vpop.f32.mrb[0].mxu0
        %1126 = vmatprep.mubr.bf16.mxu0 %v532
        %1127 = vmatmul.mubr.bf16.gmra.mrb[0].mxu0 %v531
        %v1128 = vpop.f32.mrb[0].mxu0
        %v1129 = vadd.f32 %v724, %v1128
        %v1130 = vpop.f32.mrb[0].mxu0
        %v1131 = vpop.f32.mrb[0].mxu0
        %v1132 = vadd.f32 %v724, %v1131
        %v1133 = vpop.f32.mrb[0].mxu0
        %1134 = vmatprep.mubr.bf16.mxu0 %v539
        %1135 = vmatmul.mubr.bf16.gmra.mrb[0].mxu0 %v538
        %v1136 = vpop.f32.mrb[0].mxu0
        %v1137 = vadd.f32 %v724, %v1136
        %v1138 = vpop.f32.mrb[0].mxu0
        %v1139 = vpop.f32.mrb[0].mxu0
        %v1140 = vadd.f32 %v724, %v1139
        %v1141 = vpop.f32.mrb[0].mxu0
        %1142 = vmatprep.mubr.bf16.mxu0 %v546
        %1143 = vmatmul.mubr.bf16.gmra.mrb[0].mxu0 %v545
        %v1144 = vpop.f32.mrb[0].mxu0
        %v1145 = vadd.f32 %v724, %v1144
        %v1146 = vpop.f32.mrb[0].mxu0
        %v1147 = vpop.f32.mrb[0].mxu0
        %v1148 = vadd.f32 %v724, %v1147
        %v1149 = vpop.f32.mrb[0].mxu0
        %1150 = vmatprep.mubr.bf16.mxu0 %v553
        %1151 = vmatmul.mubr.bf16.gmra.mrb[0].mxu0 %v552
        %v1152 = vpop.f32.mrb[0].mxu0
        %v1153 = vadd.f32 %v724, %v1152
        %v1154 = vpop.f32.mrb[0].mxu0
        %v1155 = vpop.f32.mrb[0].mxu0
        %v1156 = vadd.f32 %v724, %v1155
        %v1157 = vpop.f32.mrb[0].mxu0
        %1158 = vmatprep.mubr.bf16.mxu0 %v560
        %1159 = vmatmul.mubr.bf16.gmra.mrb[0].mxu0 %v559
        %v1160 = vpop.f32.mrb[0].mxu0
        %v1161 = vadd.f32 %v724, %v1160
        %v1162 = vpop.f32.mrb[0].mxu0
        %v1163 = vpop.f32.mrb[0].mxu0
        %v1164 = vadd.f32 %v724, %v1163
        %v1165 = vpop.f32.mrb[0].mxu0
        %1166 = vmatprep.mubr.bf16.mxu0 %v567
        %1167 = vmatmul.mubr.bf16.gmra.mrb[0].mxu0 %v566
        %v1168 = vpop.f32.mrb[0].mxu0
        %v1169 = vadd.f32 %v724, %v1168
        %v1170 = vpop.f32.mrb[0].mxu0
        %v1171 = vpop.f32.mrb[0].mxu0
        %v1172 = vadd.f32 %v724, %v1171
        %v1173 = vpop.f32.mrb[0].mxu0
        %1174 = vmatprep.mubr.bf16.mxu0 %v574
        %1175 = vmatmul.mubr.bf16.gmra.mrb[0].mxu0 %v573
        %v1176 = vpop.f32.mrb[0].mxu0
        %v1177 = vadd.f32 %v724, %v1176
        %v1178 = vpop.f32.mrb[0].mxu0
        %v1179 = vpop.f32.mrb[0].mxu0
        %v1180 = vadd.f32 %v724, %v1179
        %v1181 = vpop.f32.mrb[0].mxu0
        %1182 = vmatprep.mubr.bf16.mxu0 %v581
        %1183 = vmatmul.mubr.bf16.gmra.mrb[0].mxu0 %v580
        %v1184 = vpop.f32.mrb[0].mxu0
        %v1185 = vadd.f32 %v724, %v1184
        %v1186 = vpop.f32.mrb[0].mxu0
        %v1187 = vpop.f32.mrb[0].mxu0
        %v1188 = vadd.f32 %v724, %v1187
        %v1189 = vpop.f32.mrb[0].mxu0
        %1190 = vmatprep.mubr.bf16.mxu0 %v588
        %1191 = vmatmul.mubr.bf16.gmra.mrb[0].mxu0 %v587
        %v1192 = vpop.f32.mrb[0].mxu0
        %v1193 = vadd.f32 %v724, %v1192
        %v1194 = vpop.f32.mrb[0].mxu0
        %v1195 = vpop.f32.mrb[0].mxu0
        %v1196 = vadd.f32 %v724, %v1195
        %v1197 = vpop.f32.mrb[0].mxu0
        %1198 = vmatprep.mubr.bf16.mxu0 %v595
        %1199 = vmatmul.mubr.bf16.gmra.mrb[0].mxu0 %v594
        %v1200 = vpop.f32.mrb[0].mxu0
        %v1201 = vadd.f32 %v724, %v1200
        %v1202 = vpop.f32.mrb[0].mxu0
        %v1203 = vpop.f32.mrb[0].mxu0
        %v1204 = vadd.f32 %v724, %v1203
        %v1205 = vpop.f32.mrb[0].mxu0
        %1206 = vmatprep.mubr.bf16.mxu0 %v602
        %1207 = vmatmul.mubr.bf16.gmra.mrb[0].mxu0 %v601
        %v1208 = vpop.f32.mrb[0].mxu0
        %v1209 = vadd.f32 %v724, %v1208
        %v1210 = vpop.f32.mrb[0].mxu0
        %v1211 = vpop.f32.mrb[0].mxu0
        %v1212 = vadd.f32 %v724, %v1211
        %v1213 = vpop.f32.mrb[0].mxu0
        %1214 = vmatprep.mubr.bf16.mxu0 %v609
        %1215 = vmatmul.mubr.bf16.gmra.mrb[0].mxu0 %v608
        %v1216 = vpop.f32.mrb[0].mxu0
        %v1217 = vadd.f32 %v724, %v1216
        %v1218 = vpop.f32.mrb[0].mxu0
        %v1219 = vpop.f32.mrb[0].mxu0
        %v1220 = vadd.f32 %v724, %v1219
        %v1221 = vpop.f32.mrb[0].mxu0
        %1222 = vmatprep.mubr.bf16.mxu0 %v616
        %1223 = vmatmul.mubr.bf16.gmra.mrb[0].mxu0 %v615
        %v1224 = vpop.f32.mrb[0].mxu0
        %v1225 = vadd.f32 %v724, %v1224
        %v1226 = vpop.f32.mrb[0].mxu0
        %v1227 = vpop.f32.mrb[0].mxu0
        %v1228 = vadd.f32 %v724, %v1227
        %v1229 = vpop.f32.mrb[0].mxu0
        %1230 = vdwg.mxu0
        %1231 = vmatprep.subr.bf16.mxu0 0
        %1232 = vmatpush1.bf16.msra.mxu0 %v936
        %1233 = vmatprep.subr.bf16.mxu0 0
        %1234 = vmatpush1.bf16.msra.mxu0 %v937
        %1235 = vmatprep.subr.bf16.mxu0 0
        %1236 = vmatpush1.bf16.msra.mxu0 %v938
        %1237 = vmatprep.subr.bf16.mxu0 0
        %1238 = vmatpush1.bf16.msra.mxu0 %v939
        %1239 = vmatprep.subr.bf16.mxu0 0
        %1240 = vmatpush1.bf16.msra.mxu0 %v940
        %1241 = vmatprep.subr.bf16.mxu0 0
        %1242 = vmatpush1.bf16.msra.mxu0 %v941
        %1243 = vmatprep.subr.bf16.mxu0 0
        %1244 = vmatpush1.bf16.msra.mxu0 %v942
        %1245 = vmatprep.subr.bf16.mxu0 0
        %1246 = vmatpush1.bf16.msra.mxu0 %v943
        %1247 = vmatprep.subr.bf16.mxu0 0
        %1248 = vmatpush1.bf16.msra.mxu0 %v944
        %1249 = vmatprep.subr.bf16.mxu0 0
        %1250 = vmatpush1.bf16.msra.mxu0 %v945
        %1251 = vmatprep.subr.bf16.mxu0 0
        %1252 = vmatpush1.bf16.msra.mxu0 %v946
        %1253 = vmatprep.subr.bf16.mxu0 0
        %1254 = vmatpush1.bf16.msra.mxu0 %v947
        %1255 = vmatprep.subr.bf16.mxu0 0
        %1256 = vmatpush1.bf16.msra.mxu0 %v948
        %1257 = vmatprep.subr.bf16.mxu0 0
        %1258 = vmatpush1.bf16.msra.mxu0 %v949
        %1259 = vmatprep.subr.bf16.mxu0 0
        %1260 = vmatpush1.bf16.msra.mxu0 %v950
        %1261 = vmatprep.subr.bf16.mxu0 0
        %1262 = vmatpush1.bf16.msra.mxu0 %v951
        %1263 = vmatprep.mubr.bf16.mxu0 %v513
        %1264 = vmatmul.mubr.bf16.gmra.mrb[0].mxu0 %v512
        %v1265 = vpop.f32.mrb[0].mxu0
        %v1266 = vadd.f32 %v1105, %v1265
        %v1267 = vpop.f32.mrb[0].mxu0
        %v1268 = vpop.f32.mrb[0].mxu0
        %v1269 = vadd.f32 %v1108, %v1268
        %v1270 = vpop.f32.mrb[0].mxu0
        %1271 = vmatprep.mubr.bf16.mxu0 %v520
        %1272 = vmatmul.mubr.bf16.gmra.mrb[0].mxu0 %v519
        %v1273 = vpop.f32.mrb[0].mxu0
        %v1274 = vadd.f32 %v1113, %v1273
        %v1275 = vpop.f32.mrb[0].mxu0
        %v1276 = vpop.f32.mrb[0].mxu0
        %v1277 = vadd.f32 %v1116, %v1276
        %v1278 = vpop.f32.mrb[0].mxu0
        %1279 = vmatprep.mubr.bf16.mxu0 %v527
        %1280 = vmatmul.mubr.bf16.gmra.mrb[0].mxu0 %v526
        %v1281 = vpop.f32.mrb[0].mxu0
        %v1282 = vadd.f32 %v1121, %v1281
        %v1283 = vpop.f32.mrb[0].mxu0
        %v1284 = vpop.f32.mrb[0].mxu0
        %v1285 = vadd.f32 %v1124, %v1284
        %v1286 = vpop.f32.mrb[0].mxu0
        %1287 = vmatprep.mubr.bf16.mxu0 %v534
        %1288 = vmatmul.mubr.bf16.gmra.mrb[0].mxu0 %v533
        %v1289 = vpop.f32.mrb[0].mxu0
        %v1290 = vadd.f32 %v1129, %v1289
        %v1291 = vpop.f32.mrb[0].mxu0
        %v1292 = vpop.f32.mrb[0].mxu0
        %v1293 = vadd.f32 %v1132, %v1292
        %v1294 = vpop.f32.mrb[0].mxu0
        %1295 = vmatprep.mubr.bf16.mxu0 %v541
        %1296 = vmatmul.mubr.bf16.gmra.mrb[0].mxu0 %v540
        %v1297 = vpop.f32.mrb[0].mxu0
        %v1298 = vadd.f32 %v1137, %v1297
        %v1299 = vpop.f32.mrb[0].mxu0
        %v1300 = vpop.f32.mrb[0].mxu0
        %v1301 = vadd.f32 %v1140, %v1300
        %v1302 = vpop.f32.mrb[0].mxu0
        %1303 = vmatprep.mubr.bf16.mxu0 %v548
        %1304 = vmatmul.mubr.bf16.gmra.mrb[0].mxu0 %v547
        %v1305 = vpop.f32.mrb[0].mxu0
        %v1306 = vadd.f32 %v1145, %v1305
        %v1307 = vpop.f32.mrb[0].mxu0
        %v1308 = vpop.f32.mrb[0].mxu0
        %v1309 = vadd.f32 %v1148, %v1308
        %v1310 = vpop.f32.mrb[0].mxu0
        %1311 = vmatprep.mubr.bf16.mxu0 %v555
        %1312 = vmatmul.mubr.bf16.gmra.mrb[0].mxu0 %v554
        %v1313 = vpop.f32.mrb[0].mxu0
        %v1314 = vadd.f32 %v1153, %v1313
        %v1315 = vpop.f32.mrb[0].mxu0
        %v1316 = vpop.f32.mrb[0].mxu0
        %v1317 = vadd.f32 %v1156, %v1316
        %v1318 = vpop.f32.mrb[0].mxu0
        %1319 = vmatprep.mubr.bf16.mxu0 %v562
        %1320 = vmatmul.mubr.bf16.gmra.mrb[0].mxu0 %v561
        %v1321 = vpop.f32.mrb[0].mxu0
        %v1322 = vadd.f32 %v1161, %v1321
        %v1323 = vpop.f32.mrb[0].mxu0
        %v1324 = vpop.f32.mrb[0].mxu0
        %v1325 = vadd.f32 %v1164, %v1324
        %v1326 = vpop.f32.mrb[0].mxu0
        %1327 = vmatprep.mubr.bf16.mxu0 %v569
        %1328 = vmatmul.mubr.bf16.gmra.mrb[0].mxu0 %v568
        %v1329 = vpop.f32.mrb[0].mxu0
        %v1330 = vadd.f32 %v1169, %v1329
        %v1331 = vpop.f32.mrb[0].mxu0
        %v1332 = vpop.f32.mrb[0].mxu0
        %v1333 = vadd.f32 %v1172, %v1332
        %v1334 = vpop.f32.mrb[0].mxu0
        %1335 = vmatprep.mubr.bf16.mxu0 %v576
        %1336 = vmatmul.mubr.bf16.gmra.mrb[0].mxu0 %v575
        %v1337 = vpop.f32.mrb[0].mxu0
        %v1338 = vadd.f32 %v1177, %v1337
        %v1339 = vpop.f32.mrb[0].mxu0
        %v1340 = vpop.f32.mrb[0].mxu0
        %v1341 = vadd.f32 %v1180, %v1340
        %v1342 = vpop.f32.mrb[0].mxu0
        %1343 = vmatprep.mubr.bf16.mxu0 %v583
        %1344 = vmatmul.mubr.bf16.gmra.mrb[0].mxu0 %v582
        %v1345 = vpop.f32.mrb[0].mxu0
        %v1346 = vadd.f32 %v1185, %v1345
        %v1347 = vpop.f32.mrb[0].mxu0
        %v1348 = vpop.f32.mrb[0].mxu0
        %v1349 = vadd.f32 %v1188, %v1348
        %v1350 = vpop.f32.mrb[0].mxu0
        %1351 = vmatprep.mubr.bf16.mxu0 %v590
        %1352 = vmatmul.mubr.bf16.gmra.mrb[0].mxu0 %v589
        %v1353 = vpop.f32.mrb[0].mxu0
        %v1354 = vadd.f32 %v1193, %v1353
        %v1355 = vpop.f32.mrb[0].mxu0
        %v1356 = vpop.f32.mrb[0].mxu0
        %v1357 = vadd.f32 %v1196, %v1356
        %v1358 = vpop.f32.mrb[0].mxu0
        %1359 = vmatprep.mubr.bf16.mxu0 %v597
        %1360 = vmatmul.mubr.bf16.gmra.mrb[0].mxu0 %v596
        %v1361 = vpop.f32.mrb[0].mxu0
        %v1362 = vadd.f32 %v1201, %v1361
        %v1363 = vpop.f32.mrb[0].mxu0
        %v1364 = vpop.f32.mrb[0].mxu0
        %v1365 = vadd.f32 %v1204, %v1364
        %v1366 = vpop.f32.mrb[0].mxu0
        %1367 = vmatprep.mubr.bf16.mxu0 %v604
        %1368 = vmatmul.mubr.bf16.gmra.mrb[0].mxu0 %v603
        %v1369 = vpop.f32.mrb[0].mxu0
        %v1370 = vadd.f32 %v1209, %v1369
        %v1371 = vpop.f32.mrb[0].mxu0
        %v1372 = vpop.f32.mrb[0].mxu0
        %v1373 = vadd.f32 %v1212, %v1372
        %v1374 = vpop.f32.mrb[0].mxu0
        %1375 = vmatprep.mubr.bf16.mxu0 %v611
        %1376 = vmatmul.mubr.bf16.gmra.mrb[0].mxu0 %v610
        %v1377 = vpop.f32.mrb[0].mxu0
        %v1378 = vadd.f32 %v1217, %v1377
        %v1379 = vpop.f32.mrb[0].mxu0
        %v1380 = vpop.f32.mrb[0].mxu0
        %v1381 = vadd.f32 %v1220, %v1380
        %v1382 = vpop.f32.mrb[0].mxu0
        %1383 = vmatprep.mubr.bf16.mxu0 %v618
        %1384 = vmatmul.mubr.bf16.gmra.mrb[0].mxu0 %v617
        %v1385 = vpop.f32.mrb[0].mxu0
        %v1386 = vadd.f32 %v1225, %v1385
        %v1387 = vpop.f32.mrb[0].mxu0
        %v1388 = vpop.f32.mrb[0].mxu0
        %v1389 = vadd.f32 %v1228, %v1388
        %v1390 = vpop.f32.mrb[0].mxu0
        %1391 = vdwg.mxu0
        %1392 = vmatprep.subr.bf16.mxu0 0
        %1393 = vmatpush1.bf16.msra.mxu0 %v952
        %1394 = vmatprep.subr.bf16.mxu0 0
        %1395 = vmatpush1.bf16.msra.mxu0 %v953
        %1396 = vmatprep.subr.bf16.mxu0 0
        %1397 = vmatpush1.bf16.msra.mxu0 %v954
        %1398 = vmatprep.subr.bf16.mxu0 0
        %1399 = vmatpush1.bf16.msra.mxu0 %v955
        %1400 = vmatprep.subr.bf16.mxu0 0
        %1401 = vmatpush1.bf16.msra.mxu0 %v956
        %1402 = vmatprep.subr.bf16.mxu0 0
        %1403 = vmatpush1.bf16.msra.mxu0 %v957
        %1404 = vmatprep.subr.bf16.mxu0 0
        %1405 = vmatpush1.bf16.msra.mxu0 %v958
        %1406 = vmatprep.subr.bf16.mxu0 0
        %1407 = vmatpush1.bf16.msra.mxu0 %v959
        %1408 = vmatprep.subr.bf16.mxu0 0
        %1409 = vmatpush1.bf16.msra.mxu0 %v960
        %1410 = vmatprep.subr.bf16.mxu0 0
        %1411 = vmatpush1.bf16.msra.mxu0 %v961
        %1412 = vmatprep.subr.bf16.mxu0 0
        %1413 = vmatpush1.bf16.msra.mxu0 %v962
        %1414 = vmatprep.subr.bf16.mxu0 0
        %1415 = vmatpush1.bf16.msra.mxu0 %v963
        %1416 = vmatprep.subr.bf16.mxu0 0
        %1417 = vmatpush1.bf16.msra.mxu0 %v964
        %1418 = vmatprep.subr.bf16.mxu0 0
        %1419 = vmatpush1.bf16.msra.mxu0 %v965
        %1420 = vmatprep.subr.bf16.mxu0 0
        %1421 = vmatpush1.bf16.msra.mxu0 %v966
        %1422 = vmatprep.subr.bf16.mxu0 0
        %1423 = vmatpush1.bf16.msra.mxu0 %v967
        %1424 = vmatprep.mubr.bf16.mxu0 %v515
        %1425 = vmatmul.mubr.bf16.gmra.mrb[0].mxu0 %v514
        %v1426 = vpop.f32.mrb[0].mxu0
        %v1427 = vadd.f32 %v1266, %v1426
        %v1428 = vpop.f32.mrb[0].mxu0
        %v1429 = vpop.f32.mrb[0].mxu0
        %v1430 = vadd.f32 %v1269, %v1429
        %v1431 = vpop.f32.mrb[0].mxu0
        %1432 = vmatprep.mubr.bf16.mxu0 %v522
        %1433 = vmatmul.mubr.bf16.gmra.mrb[0].mxu0 %v521
        %v1434 = vpop.f32.mrb[0].mxu0
        %v1435 = vadd.f32 %v1274, %v1434
        %v1436 = vpop.f32.mrb[0].mxu0
        %v1437 = vpop.f32.mrb[0].mxu0
        %v1438 = vadd.f32 %v1277, %v1437
        %v1439 = vpop.f32.mrb[0].mxu0
        %1440 = vmatprep.mubr.bf16.mxu0 %v529
        %1441 = vmatmul.mubr.bf16.gmra.mrb[0].mxu0 %v528
        %v1442 = vpop.f32.mrb[0].mxu0
        %v1443 = vadd.f32 %v1282, %v1442
        %v1444 = vpop.f32.mrb[0].mxu0
        %v1445 = vpop.f32.mrb[0].mxu0
        %v1446 = vadd.f32 %v1285, %v1445
        %v1447 = vpop.f32.mrb[0].mxu0
        %1448 = vmatprep.mubr.bf16.mxu0 %v536
        %1449 = vmatmul.mubr.bf16.gmra.mrb[0].mxu0 %v535
        %v1450 = vpop.f32.mrb[0].mxu0
        %v1451 = vadd.f32 %v1290, %v1450
        %v1452 = vpop.f32.mrb[0].mxu0
        %v1453 = vpop.f32.mrb[0].mxu0
        %v1454 = vadd.f32 %v1293, %v1453
        %v1455 = vpop.f32.mrb[0].mxu0
        %1456 = vmatprep.mubr.bf16.mxu0 %v543
        %1457 = vmatmul.mubr.bf16.gmra.mrb[0].mxu0 %v542
        %v1458 = vpop.f32.mrb[0].mxu0
        %v1459 = vadd.f32 %v1298, %v1458
        %v1460 = vpop.f32.mrb[0].mxu0
        %v1461 = vpop.f32.mrb[0].mxu0
        %v1462 = vadd.f32 %v1301, %v1461
        %v1463 = vpop.f32.mrb[0].mxu0
        %1464 = vmatprep.mubr.bf16.mxu0 %v550
        %1465 = vmatmul.mubr.bf16.gmra.mrb[0].mxu0 %v549
        %v1466 = vpop.f32.mrb[0].mxu0
        %v1467 = vadd.f32 %v1306, %v1466
        %v1468 = vpop.f32.mrb[0].mxu0
        %v1469 = vpop.f32.mrb[0].mxu0
        %v1470 = vadd.f32 %v1309, %v1469
        %v1471 = vpop.f32.mrb[0].mxu0
        %1472 = vmatprep.mubr.bf16.mxu0 %v557
        %1473 = vmatmul.mubr.bf16.gmra.mrb[0].mxu0 %v556
        %v1474 = vpop.f32.mrb[0].mxu0
        %v1475 = vadd.f32 %v1314, %v1474
        %v1476 = vpop.f32.mrb[0].mxu0
        %v1477 = vpop.f32.mrb[0].mxu0
        %v1478 = vadd.f32 %v1317, %v1477
        %v1479 = vpop.f32.mrb[0].mxu0
        %1480 = vmatprep.mubr.bf16.mxu0 %v564
        %1481 = vmatmul.mubr.bf16.gmra.mrb[0].mxu0 %v563
        %v1482 = vpop.f32.mrb[0].mxu0
        %v1483 = vadd.f32 %v1322, %v1482
        %v1484 = vpop.f32.mrb[0].mxu0
        %v1485 = vpop.f32.mrb[0].mxu0
        %v1486 = vadd.f32 %v1325, %v1485
        %v1487 = vpop.f32.mrb[0].mxu0
        %1488 = vmatprep.mubr.bf16.mxu0 %v571
        %1489 = vmatmul.mubr.bf16.gmra.mrb[0].mxu0 %v570
        %v1490 = vpop.f32.mrb[0].mxu0
        %v1491 = vadd.f32 %v1330, %v1490
        %v1492 = vpop.f32.mrb[0].mxu0
        %v1493 = vpop.f32.mrb[0].mxu0
        %v1494 = vadd.f32 %v1333, %v1493
        %v1495 = vpop.f32.mrb[0].mxu0
        %1496 = vmatprep.mubr.bf16.mxu0 %v578
        %1497 = vmatmul.mubr.bf16.gmra.mrb[0].mxu0 %v577
        %v1498 = vpop.f32.mrb[0].mxu0
        %v1499 = vadd.f32 %v1338, %v1498
        %v1500 = vpop.f32.mrb[0].mxu0
        %v1501 = vpop.f32.mrb[0].mxu0
        %v1502 = vadd.f32 %v1341, %v1501
        %v1503 = vpop.f32.mrb[0].mxu0
        %1504 = vmatprep.mubr.bf16.mxu0 %v585
        %1505 = vmatmul.mubr.bf16.gmra.mrb[0].mxu0 %v584
        %v1506 = vpop.f32.mrb[0].mxu0
        %v1507 = vadd.f32 %v1346, %v1506
        %v1508 = vpop.f32.mrb[0].mxu0
        %v1509 = vpop.f32.mrb[0].mxu0
        %v1510 = vadd.f32 %v1349, %v1509
        %v1511 = vpop.f32.mrb[0].mxu0
        %1512 = vmatprep.mubr.bf16.mxu0 %v592
        %1513 = vmatmul.mubr.bf16.gmra.mrb[0].mxu0 %v591
        %v1514 = vpop.f32.mrb[0].mxu0
        %v1515 = vadd.f32 %v1354, %v1514
        %v1516 = vpop.f32.mrb[0].mxu0
        %v1517 = vpop.f32.mrb[0].mxu0
        %v1518 = vadd.f32 %v1357, %v1517
        %v1519 = vpop.f32.mrb[0].mxu0
        %1520 = vmatprep.mubr.bf16.mxu0 %v599
        %1521 = vmatmul.mubr.bf16.gmra.mrb[0].mxu0 %v598
        %v1522 = vpop.f32.mrb[0].mxu0
        %v1523 = vadd.f32 %v1362, %v1522
        %v1524 = vpop.f32.mrb[0].mxu0
        %v1525 = vpop.f32.mrb[0].mxu0
        %v1526 = vadd.f32 %v1365, %v1525
        %v1527 = vpop.f32.mrb[0].mxu0
        %1528 = vmatprep.mubr.bf16.mxu0 %v606
        %1529 = vmatmul.mubr.bf16.gmra.mrb[0].mxu0 %v605
        %v1530 = vpop.f32.mrb[0].mxu0
        %v1531 = vadd.f32 %v1370, %v1530
        %v1532 = vpop.f32.mrb[0].mxu0
        %v1533 = vpop.f32.mrb[0].mxu0
        %v1534 = vadd.f32 %v1373, %v1533
        %v1535 = vpop.f32.mrb[0].mxu0
        %1536 = vmatprep.mubr.bf16.mxu0 %v613
        %1537 = vmatmul.mubr.bf16.gmra.mrb[0].mxu0 %v612
        %v1538 = vpop.f32.mrb[0].mxu0
        %v1539 = vadd.f32 %v1378, %v1538
        %v1540 = vpop.f32.mrb[0].mxu0
        %v1541 = vpop.f32.mrb[0].mxu0
        %v1542 = vadd.f32 %v1381, %v1541
        %v1543 = vpop.f32.mrb[0].mxu0
        %1544 = vmatprep.mubr.bf16.mxu0 %v620
        %1545 = vmatmul.mubr.bf16.gmra.mrb[0].mxu0 %v619
        %v1546 = vpop.f32.mrb[0].mxu0
        %v1547 = vadd.f32 %v1386, %v1546
        %v1548 = vpop.f32.mrb[0].mxu0
        %v1549 = vpop.f32.mrb[0].mxu0
        %v1550 = vadd.f32 %v1389, %v1549
        %v1551 = vpop.f32.mrb[0].mxu0
        %1552 = vdwg.mxu0
        %1553 = vmatprep.subr.bf16.mxu0 0
        %1554 = vmatpush1.bf16.msra.mxu0 %v1068
        %1555 = vmatprep.subr.bf16.mxu0 0
        %1556 = vmatpush1.bf16.msra.mxu0 0
        %1557 = vmatprep.subr.bf16.mxu0 0
        %1558 = vmatpush1.bf16.msra.mxu0 0
        %1559 = vmatprep.subr.bf16.mxu0 0
        %1560 = vmatpush1.bf16.msra.mxu0 0
        %1561 = vmatprep.subr.bf16.mxu0 0
        %1562 = vmatpush1.bf16.msra.mxu0 0
        %1563 = vmatprep.subr.bf16.mxu0 0
        %1564 = vmatpush1.bf16.msra.mxu0 0
        %1565 = vmatprep.subr.bf16.mxu0 0
        %1566 = vmatpush1.bf16.msra.mxu0 0
        %1567 = vmatprep.subr.bf16.mxu0 0
        %1568 = vmatpush1.bf16.msra.mxu0 0
        %1569 = vmatprep.subr.bf16.mxu0 0
        %1570 = vmatpush1.bf16.msra.mxu0 0
        %1571 = vmatprep.subr.bf16.mxu0 0
        %1572 = vmatpush1.bf16.msra.mxu0 0
        %1573 = vmatprep.subr.bf16.mxu0 0
        %1574 = vmatpush1.bf16.msra.mxu0 0
        %1575 = vmatprep.subr.bf16.mxu0 0
        %1576 = vmatpush1.bf16.msra.mxu0 0
        %1577 = vmatprep.subr.bf16.mxu0 0
        %1578 = vmatpush1.bf16.msra.mxu0 0
        %1579 = vmatprep.subr.bf16.mxu0 0
        %1580 = vmatpush1.bf16.msra.mxu0 0
        %1581 = vmatprep.subr.bf16.mxu0 0
        %1582 = vmatpush1.bf16.msra.mxu0 0
        %1583 = vmatprep.subr.bf16.mxu0 0
        %1584 = vmatpush1.bf16.msra.mxu0 0
        %1585 = vmatprep.mubr.bf16.mxu0 0
        %1586 = vmatmul.mubr.bf16.gmra.mrb[0].mxu0 %v1019
        %v1587 = vpop.f32.mrb[0].mxu0
        %v1588 = vadd.f32 %v1427, %v1587
        %v1589 = vpop.f32.mrb[0].mxu0
        %v1590 = vpop.f32.mrb[0].mxu0
        %v1591 = vadd.f32 %v1430, %v1590
        %v1592 = vpop.f32.mrb[0].mxu0
        %1593 = vmatprep.mubr.bf16.mxu0 0
        %1594 = vmatmul.mubr.bf16.gmra.mrb[0].mxu0 %v1022
        %v1595 = vpop.f32.mrb[0].mxu0
        %v1596 = vadd.f32 %v1435, %v1595
        %v1597 = vpop.f32.mrb[0].mxu0
        %v1598 = vpop.f32.mrb[0].mxu0
        %v1599 = vadd.f32 %v1438, %v1598
        %v1600 = vpop.f32.mrb[0].mxu0
        %1601 = vmatprep.mubr.bf16.mxu0 0
        %1602 = vmatmul.mubr.bf16.gmra.mrb[0].mxu0 %v1025
        %v1603 = vpop.f32.mrb[0].mxu0
        %v1604 = vadd.f32 %v1443, %v1603
        %v1605 = vpop.f32.mrb[0].mxu0
        %v1606 = vpop.f32.mrb[0].mxu0
        %v1607 = vadd.f32 %v1446, %v1606
        %v1608 = vpop.f32.mrb[0].mxu0
        %1609 = vmatprep.mubr.bf16.mxu0 0
        %1610 = vmatmul.mubr.bf16.gmra.mrb[0].mxu0 %v1028
        %v1611 = vpop.f32.mrb[0].mxu0
        %v1612 = vadd.f32 %v1451, %v1611
        %v1613 = vpop.f32.mrb[0].mxu0
        %v1614 = vpop.f32.mrb[0].mxu0
        %v1615 = vadd.f32 %v1454, %v1614
        %v1616 = vpop.f32.mrb[0].mxu0
        %1617 = vmatprep.mubr.bf16.mxu0 0
        %1618 = vmatmul.mubr.bf16.gmra.mrb[0].mxu0 %v1031
        %v1619 = vpop.f32.mrb[0].mxu0
        %v1620 = vadd.f32 %v1459, %v1619
        %v1621 = vpop.f32.mrb[0].mxu0
        %v1622 = vpop.f32.mrb[0].mxu0
        %v1623 = vadd.f32 %v1462, %v1622
        %v1624 = vpop.f32.mrb[0].mxu0
        %1625 = vmatprep.mubr.bf16.mxu0 0
        %1626 = vmatmul.mubr.bf16.gmra.mrb[0].mxu0 %v1034
        %v1627 = vpop.f32.mrb[0].mxu0
        %v1628 = vadd.f32 %v1467, %v1627
        %v1629 = vpop.f32.mrb[0].mxu0
        %v1630 = vpop.f32.mrb[0].mxu0
        %v1631 = vadd.f32 %v1470, %v1630
        %v1632 = vpop.f32.mrb[0].mxu0
        %1633 = vmatprep.mubr.bf16.mxu0 0
        %1634 = vmatmul.mubr.bf16.gmra.mrb[0].mxu0 %v1037
        %v1635 = vpop.f32.mrb[0].mxu0
        %v1636 = vadd.f32 %v1475, %v1635
        %v1637 = vpop.f32.mrb[0].mxu0
        %v1638 = vpop.f32.mrb[0].mxu0
        %v1639 = vadd.f32 %v1478, %v1638
        %v1640 = vpop.f32.mrb[0].mxu0
        %1641 = vmatprep.mubr.bf16.mxu0 0
        %1642 = vmatmul.mubr.bf16.gmra.mrb[0].mxu0 %v1040
        %v1643 = vpop.f32.mrb[0].mxu0
        %v1644 = vadd.f32 %v1483, %v1643
        %v1645 = vpop.f32.mrb[0].mxu0
        %v1646 = vpop.f32.mrb[0].mxu0
        %v1647 = vadd.f32 %v1486, %v1646
        %v1648 = vpop.f32.mrb[0].mxu0
        %1649 = vmatprep.mubr.bf16.mxu0 0
        %1650 = vmatmul.mubr.bf16.gmra.mrb[0].mxu0 %v1043
        %v1651 = vpop.f32.mrb[0].mxu0
        %v1652 = vadd.f32 %v1491, %v1651
        %v1653 = vpop.f32.mrb[0].mxu0
        %v1654 = vpop.f32.mrb[0].mxu0
        %v1655 = vadd.f32 %v1494, %v1654
        %v1656 = vpop.f32.mrb[0].mxu0
        %1657 = vmatprep.mubr.bf16.mxu0 0
        %1658 = vmatmul.mubr.bf16.gmra.mrb[0].mxu0 %v1046
        %v1659 = vpop.f32.mrb[0].mxu0
        %v1660 = vadd.f32 %v1499, %v1659
        %v1661 = vpop.f32.mrb[0].mxu0
        %v1662 = vpop.f32.mrb[0].mxu0
        %v1663 = vadd.f32 %v1502, %v1662
        %v1664 = vpop.f32.mrb[0].mxu0
        %1665 = vmatprep.mubr.bf16.mxu0 0
        %1666 = vmatmul.mubr.bf16.gmra.mrb[0].mxu0 %v1049
        %v1667 = vpop.f32.mrb[0].mxu0
        %v1668 = vadd.f32 %v1507, %v1667
        %v1669 = vpop.f32.mrb[0].mxu0
        %v1670 = vpop.f32.mrb[0].mxu0
        %v1671 = vadd.f32 %v1510, %v1670
        %v1672 = vpop.f32.mrb[0].mxu0
        %1673 = vmatprep.mubr.bf16.mxu0 0
        %1674 = vmatmul.mubr.bf16.gmra.mrb[0].mxu0 %v1052
        %v1675 = vpop.f32.mrb[0].mxu0
        %v1676 = vadd.f32 %v1515, %v1675
        %v1677 = vpop.f32.mrb[0].mxu0
        %v1678 = vpop.f32.mrb[0].mxu0
        %v1679 = vadd.f32 %v1518, %v1678
        %v1680 = vpop.f32.mrb[0].mxu0
        %1681 = vmatprep.mubr.bf16.mxu0 0
        %1682 = vmatmul.mubr.bf16.gmra.mrb[0].mxu0 %v1055
        %v1683 = vpop.f32.mrb[0].mxu0
        %v1684 = vadd.f32 %v1523, %v1683
        %v1685 = vpop.f32.mrb[0].mxu0
        %v1686 = vpop.f32.mrb[0].mxu0
        %v1687 = vadd.f32 %v1526, %v1686
        %v1688 = vpop.f32.mrb[0].mxu0
        %1689 = vmatprep.mubr.bf16.mxu0 0
        %1690 = vmatmul.mubr.bf16.gmra.mrb[0].mxu0 %v1058
        %v1691 = vpop.f32.mrb[0].mxu0
        %v1692 = vadd.f32 %v1531, %v1691
        %v1693 = vpop.f32.mrb[0].mxu0
        %v1694 = vpop.f32.mrb[0].mxu0
        %v1695 = vadd.f32 %v1534, %v1694
        %v1696 = vpop.f32.mrb[0].mxu0
        %1697 = vmatprep.mubr.bf16.mxu0 0
        %1698 = vmatmul.mubr.bf16.gmra.mrb[0].mxu0 %v1061
        %v1699 = vpop.f32.mrb[0].mxu0
        %v1700 = vadd.f32 %v1539, %v1699
        %v1701 = vpop.f32.mrb[0].mxu0
        %v1702 = vpop.f32.mrb[0].mxu0
        %v1703 = vadd.f32 %v1542, %v1702
        %v1704 = vpop.f32.mrb[0].mxu0
        %1705 = vmatprep.mubr.bf16.mxu0 0
        %1706 = vmatmul.mubr.bf16.gmra.mrb[0].mxu0 %v1064
        %v1707 = vpop.f32.mrb[0].mxu0
        %v1708 = vadd.f32 %v1547, %v1707
        %v1709 = vpop.f32.mrb[0].mxu0
        %v1710 = vpop.f32.mrb[0].mxu0
        %v1711 = vadd.f32 %v1550, %v1710
        %v1712 = vpop.f32.mrb[0].mxu0
        %1713 = vdwg.mxu0
        %v1714 = vmax.f32 %v1588, 0.0
        %v1715 = vmax.f32 %v1591, 0.0
        %v1716 = vmax.f32 %v1596, 0.0
        %v1717 = vmax.f32 %v1599, 0.0
        %v1718 = vmax.f32 %v1604, 0.0
        %v1719 = vmax.f32 %v1607, 0.0
        %v1720 = vmax.f32 %v1612, 0.0
        %v1721 = vmax.f32 %v1615, 0.0
        %v1722 = vmax.f32 %v1620, 0.0
        %v1723 = vmax.f32 %v1623, 0.0
        %v1724 = vmax.f32 %v1628, 0.0
        %v1725 = vmax.f32 %v1631, 0.0
        %v1726 = vmax.f32 %v1636, 0.0
        %v1727 = vmax.f32 %v1639, 0.0
        %v1728 = vmax.f32 %v1644, 0.0
        %v1729 = vmax.f32 %v1647, 0.0
        %v1730 = vmax.f32 %v1652, 0.0
        %v1731 = vmax.f32 %v1655, 0.0
        %v1732 = vmax.f32 %v1660, 0.0
        %v1733 = vmax.f32 %v1663, 0.0
        %v1734 = vmax.f32 %v1668, 0.0
        %v1735 = vmax.f32 %v1671, 0.0
        %v1736 = vmax.f32 %v1676, 0.0
        %v1737 = vmax.f32 %v1679, 0.0
        %v1738 = vmax.f32 %v1684, 0.0
        %v1739 = vmax.f32 %v1687, 0.0
        %v1740 = vmax.f32 %v1692, 0.0
        %v1741 = vmax.f32 %v1695, 0.0
        %v1742 = vmax.f32 %v1700, 0.0
        %v1743 = vmax.f32 %v1703, 0.0
        %v1744 = vmax.f32 %v1708, 0.0
        %v1745 = vmax.f32 %v1711, 0.0
        %v1746 = vpack.c.bf16 %v1715, %v1714
        %v1747 = vpack.c.bf16 %v1717, %v1716
        %v1748 = vpack.c.bf16 %v1719, %v1718
        %v1749 = vpack.c.bf16 %v1721, %v1720
        %v1750 = vpack.c.bf16 %v1723, %v1722
        %v1751 = vpack.c.bf16 %v1725, %v1724
        %v1752 = vpack.c.bf16 %v1727, %v1726
        %v1753 = vpack.c.bf16 %v1729, %v1728
        %v1754 = vpack.c.bf16 %v1731, %v1730
        %v1755 = vpack.c.bf16 %v1733, %v1732
        %v1756 = vpack.c.bf16 %v1735, %v1734
        %v1757 = vpack.c.bf16 %v1737, %v1736
        %v1758 = vpack.c.bf16 %v1739, %v1738
        %v1759 = vpack.c.bf16 %v1741, %v1740
        %v1760 = vpack.c.bf16 %v1743, %v1742
        %v1761 = vpack.c.bf16 %v1745, %v1744
        %v1762 = vld [vmem:[%s3] sm:$0xf]
        %v1763 = vld [vmem:[%s3 + $0x4] sm:$0xf]
        %v1764 = vld [vmem:[%s3 + $0x8] sm:$0xf]
        %v1765 = vld [vmem:[%s3 + $0xc] sm:$0xf]
        %v1766 = vld [vmem:[%s3 + $0x10] sm:$0xf]
        %v1767 = vld [vmem:[%s3 + $0x14] sm:$0xf]
        %v1768 = vld [vmem:[%s3 + $0x18] sm:$0xf]
        %v1769 = vld [vmem:[%s3 + $0x1c] sm:$0xf]
        %v1770 = vld [vmem:[%s4] sm:$0x1]
        %v1772 = vlaneseq
        %v1773 = vshrl.u32 %v1772, 7
        %v1774 = vsub.s32 0, %v1773
        %v1775 = vrot.slane %v1770, %v1774
        %v1785 = vunpack.c.l.b16 %v1762
        %v1786 = vunpack.c.l.b16 %v1763
        %v1787 = vunpack.c.l.b16 %v1764
        %v1788 = vunpack.c.l.b16 %v1765
        %v1789 = vunpack.c.l.b16 %v1766
        %v1790 = vunpack.c.l.b16 %v1767
        %v1791 = vunpack.c.l.b16 %v1768
        %v1792 = vunpack.c.l.b16 %v1769
        %v1793 = vpack.c.b16 %v1786, %v1785
        %v1794 = vpack.c.b16 %v1788, %v1787
        %v1795 = vpack.c.b16 %v1790, %v1789
        %v1796 = vpack.c.b16 %v1792, %v1791
        %vm1801 = vcmask 523264
        %v1803 = vsel %vm1801, %v1746, 0
        %v1806 = vsel %vm1801, %v1747, 0
        %v1809 = vsel %vm1801, %v1748, 0
        %v1812 = vsel %vm1801, %v1749, 0
        %v1815 = vsel %vm1801, %v1750, 0
        %v1818 = vsel %vm1801, %v1751, 0
        %v1821 = vsel %vm1801, %v1752, 0
        %v1824 = vsel %vm1801, %v1753, 0
        %v1827 = vsel %vm1801, %v1754, 0
        %v1830 = vsel %vm1801, %v1755, 0
        %v1833 = vsel %vm1801, %v1756, 0
        %v1836 = vsel %vm1801, %v1757, 0
        %v1839 = vsel %vm1801, %v1758, 0
        %v1842 = vsel %vm1801, %v1759, 0
        %v1845 = vsel %vm1801, %v1760, 0
        %v1848 = vsel %vm1801, %v1761, 0
        %1850 = vmatprep.subr.bf16.mxu0 0
        %1851 = vmatpush1.bf16.msra.mxu0 %v1793
        %1852 = vmatprep.subr.bf16.mxu0 0
        %1853 = vmatpush1.bf16.msra.mxu0 %v1794
        %1854 = vmatprep.subr.bf16.mxu0 0
        %1855 = vmatpush1.bf16.msra.mxu0 %v1795
        %1856 = vmatprep.subr.bf16.mxu0 0
        %1857 = vmatpush1.bf16.msra.mxu0 %v1796
        %1858 = vmatprep.subr.bf16.mxu0 0
        %1859 = vmatpush1.bf16.msra.mxu0 0
        %1860 = vmatprep.subr.bf16.mxu0 0
        %1861 = vmatpush1.bf16.msra.mxu0 0
        %1862 = vmatprep.subr.bf16.mxu0 0
        %1863 = vmatpush1.bf16.msra.mxu0 0
        %1864 = vmatprep.subr.bf16.mxu0 0
        %1865 = vmatpush1.bf16.msra.mxu0 0
        %1866 = vmatprep.subr.bf16.mxu0 0
        %1867 = vmatpush1.bf16.msra.mxu0 0
        %1868 = vmatprep.subr.bf16.mxu0 0
        %1869 = vmatpush1.bf16.msra.mxu0 0
        %1870 = vmatprep.subr.bf16.mxu0 0
        %1871 = vmatpush1.bf16.msra.mxu0 0
        %1872 = vmatprep.subr.bf16.mxu0 0
        %1873 = vmatpush1.bf16.msra.mxu0 0
        %1874 = vmatprep.subr.bf16.mxu0 0
        %1875 = vmatpush1.bf16.msra.mxu0 0
        %1876 = vmatprep.subr.bf16.mxu0 0
        %1877 = vmatpush1.bf16.msra.mxu0 0
        %1878 = vmatprep.subr.bf16.mxu0 0
        %1879 = vmatpush1.bf16.msra.mxu0 0
        %1880 = vmatprep.subr.bf16.mxu0 0
        %1881 = vmatpush1.bf16.msra.mxu0 0
        %1882 = vmatprep.mubr.bf16.mxu0 0
        %1883 = vmatmul.mubr.bf16.gmra.mrb[0].mxu0 %v1803
        %v1884 = vpop.f32.mrb[0].mxu0
        %v1885 = vadd.f32 %v1775, %v1884
        %v1886 = vpop.f32.mrb[0].mxu0
        %v1887 = vpop.f32.mrb[0].mxu0
        %v1888 = vadd.f32 %v1775, %v1887
        %v1889 = vpop.f32.mrb[0].mxu0
        %1890 = vmatprep.mubr.bf16.mxu0 0
        %1891 = vmatmul.mubr.bf16.gmra.mrb[0].mxu0 %v1806
        %v1892 = vpop.f32.mrb[0].mxu0
        %v1893 = vadd.f32 %v1775, %v1892
        %v1894 = vpop.f32.mrb[0].mxu0
        %v1895 = vpop.f32.mrb[0].mxu0
        %v1896 = vadd.f32 %v1775, %v1895
        %v1897 = vpop.f32.mrb[0].mxu0
        %1898 = vmatprep.mubr.bf16.mxu0 0
        %1899 = vmatmul.mubr.bf16.gmra.mrb[0].mxu0 %v1809
        %v1900 = vpop.f32.mrb[0].mxu0
        %v1901 = vadd.f32 %v1775, %v1900
        %v1902 = vpop.f32.mrb[0].mxu0
        %v1903 = vpop.f32.mrb[0].mxu0
        %v1904 = vadd.f32 %v1775, %v1903
        %v1905 = vpop.f32.mrb[0].mxu0
        %1906 = vmatprep.mubr.bf16.mxu0 0
        %1907 = vmatmul.mubr.bf16.gmra.mrb[0].mxu0 %v1812
        %v1908 = vpop.f32.mrb[0].mxu0
        %v1909 = vadd.f32 %v1775, %v1908
        %v1910 = vpop.f32.mrb[0].mxu0
        %v1911 = vpop.f32.mrb[0].mxu0
        %v1912 = vadd.f32 %v1775, %v1911
        %v1913 = vpop.f32.mrb[0].mxu0
        %1914 = vmatprep.mubr.bf16.mxu0 0
        %1915 = vmatmul.mubr.bf16.gmra.mrb[0].mxu0 %v1815
        %v1916 = vpop.f32.mrb[0].mxu0
        %v1917 = vadd.f32 %v1775, %v1916
        %v1918 = vpop.f32.mrb[0].mxu0
        %v1919 = vpop.f32.mrb[0].mxu0
        %v1920 = vadd.f32 %v1775, %v1919
        %v1921 = vpop.f32.mrb[0].mxu0
        %1922 = vmatprep.mubr.bf16.mxu0 0
        %1923 = vmatmul.mubr.bf16.gmra.mrb[0].mxu0 %v1818
        %v1924 = vpop.f32.mrb[0].mxu0
        %v1925 = vadd.f32 %v1775, %v1924
        %v1926 = vpop.f32.mrb[0].mxu0
        %v1927 = vpop.f32.mrb[0].mxu0
        %v1928 = vadd.f32 %v1775, %v1927
        %v1929 = vpop.f32.mrb[0].mxu0
        %1930 = vmatprep.mubr.bf16.mxu0 0
        %1931 = vmatmul.mubr.bf16.gmra.mrb[0].mxu0 %v1821
        %v1932 = vpop.f32.mrb[0].mxu0
        %v1933 = vadd.f32 %v1775, %v1932
        %v1934 = vpop.f32.mrb[0].mxu0
        %v1935 = vpop.f32.mrb[0].mxu0
        %v1936 = vadd.f32 %v1775, %v1935
        %v1937 = vpop.f32.mrb[0].mxu0
        %1938 = vmatprep.mubr.bf16.mxu0 0
        %1939 = vmatmul.mubr.bf16.gmra.mrb[0].mxu0 %v1824
        %v1940 = vpop.f32.mrb[0].mxu0
        %v1941 = vadd.f32 %v1775, %v1940
        %v1942 = vpop.f32.mrb[0].mxu0
        %v1943 = vpop.f32.mrb[0].mxu0
        %v1944 = vadd.f32 %v1775, %v1943
        %v1945 = vpop.f32.mrb[0].mxu0
        %1946 = vmatprep.mubr.bf16.mxu0 0
        %1947 = vmatmul.mubr.bf16.gmra.mrb[0].mxu0 %v1827
        %v1948 = vpop.f32.mrb[0].mxu0
        %v1949 = vadd.f32 %v1775, %v1948
        %v1950 = vpop.f32.mrb[0].mxu0
        %v1951 = vpop.f32.mrb[0].mxu0
        %v1952 = vadd.f32 %v1775, %v1951
        %v1953 = vpop.f32.mrb[0].mxu0
        %1954 = vmatprep.mubr.bf16.mxu0 0
        %1955 = vmatmul.mubr.bf16.gmra.mrb[0].mxu0 %v1830
        %v1956 = vpop.f32.mrb[0].mxu0
        %v1957 = vadd.f32 %v1775, %v1956
        %v1958 = vpop.f32.mrb[0].mxu0
        %v1959 = vpop.f32.mrb[0].mxu0
        %v1960 = vadd.f32 %v1775, %v1959
        %v1961 = vpop.f32.mrb[0].mxu0
        %1962 = vmatprep.mubr.bf16.mxu0 0
        %1963 = vmatmul.mubr.bf16.gmra.mrb[0].mxu0 %v1833
        %v1964 = vpop.f32.mrb[0].mxu0
        %v1965 = vadd.f32 %v1775, %v1964
        %v1966 = vpop.f32.mrb[0].mxu0
        %v1967 = vpop.f32.mrb[0].mxu0
        %v1968 = vadd.f32 %v1775, %v1967
        %v1969 = vpop.f32.mrb[0].mxu0
        %1970 = vmatprep.mubr.bf16.mxu0 0
        %1971 = vmatmul.mubr.bf16.gmra.mrb[0].mxu0 %v1836
        %v1972 = vpop.f32.mrb[0].mxu0
        %v1973 = vadd.f32 %v1775, %v1972
        %v1974 = vpop.f32.mrb[0].mxu0
        %v1975 = vpop.f32.mrb[0].mxu0
        %v1976 = vadd.f32 %v1775, %v1975
        %v1977 = vpop.f32.mrb[0].mxu0
        %1978 = vmatprep.mubr.bf16.mxu0 0
        %1979 = vmatmul.mubr.bf16.gmra.mrb[0].mxu0 %v1839
        %v1980 = vpop.f32.mrb[0].mxu0
        %v1981 = vadd.f32 %v1775, %v1980
        %v1982 = vpop.f32.mrb[0].mxu0
        %v1983 = vpop.f32.mrb[0].mxu0
        %v1984 = vadd.f32 %v1775, %v1983
        %v1985 = vpop.f32.mrb[0].mxu0
        %1986 = vmatprep.mubr.bf16.mxu0 0
        %1987 = vmatmul.mubr.bf16.gmra.mrb[0].mxu0 %v1842
        %v1988 = vpop.f32.mrb[0].mxu0
        %v1989 = vadd.f32 %v1775, %v1988
        %v1990 = vpop.f32.mrb[0].mxu0
        %v1991 = vpop.f32.mrb[0].mxu0
        %v1992 = vadd.f32 %v1775, %v1991
        %v1993 = vpop.f32.mrb[0].mxu0
        %1994 = vmatprep.mubr.bf16.mxu0 0
        %1995 = vmatmul.mubr.bf16.gmra.mrb[0].mxu0 %v1845
        %v1996 = vpop.f32.mrb[0].mxu0
        %v1997 = vadd.f32 %v1775, %v1996
        %v1998 = vpop.f32.mrb[0].mxu0
        %v1999 = vpop.f32.mrb[0].mxu0
        %v2000 = vadd.f32 %v1775, %v1999
        %v2001 = vpop.f32.mrb[0].mxu0
        %2002 = vmatprep.mubr.bf16.mxu0 0
        %2003 = vmatmul.mubr.bf16.gmra.mrb[0].mxu0 %v1848
        %v2004 = vpop.f32.mrb[0].mxu0
        %v2005 = vadd.f32 %v1775, %v2004
        %v2006 = vpop.f32.mrb[0].mxu0
        %v2007 = vpop.f32.mrb[0].mxu0
        %v2008 = vadd.f32 %v1775, %v2007
        %v2009 = vpop.f32.mrb[0].mxu0
        %2010 = vdwg.mxu0
        %v2011 = vmax.f32 %v1885, 0.0
        %v2012 = vmax.f32 %v1888, 0.0
        %v2013 = vmax.f32 %v1893, 0.0
        %v2014 = vmax.f32 %v1896, 0.0
        %v2015 = vmax.f32 %v1901, 0.0
        %v2016 = vmax.f32 %v1904, 0.0
        %v2017 = vmax.f32 %v1909, 0.0
        %v2018 = vmax.f32 %v1912, 0.0
        %v2019 = vmax.f32 %v1917, 0.0
        %v2020 = vmax.f32 %v1920, 0.0
        %v2021 = vmax.f32 %v1925, 0.0
        %v2022 = vmax.f32 %v1928, 0.0
        %v2023 = vmax.f32 %v1933, 0.0
        %v2024 = vmax.f32 %v1936, 0.0
        %v2025 = vmax.f32 %v1941, 0.0
        %v2026 = vmax.f32 %v1944, 0.0
        %v2027 = vmax.f32 %v1949, 0.0
        %v2028 = vmax.f32 %v1952, 0.0
        %v2029 = vmax.f32 %v1957, 0.0
        %v2030 = vmax.f32 %v1960, 0.0
        %v2031 = vmax.f32 %v1965, 0.0
        %v2032 = vmax.f32 %v1968, 0.0
        %v2033 = vmax.f32 %v1973, 0.0
        %v2034 = vmax.f32 %v1976, 0.0
        %v2035 = vmax.f32 %v1981, 0.0
        %v2036 = vmax.f32 %v1984, 0.0
        %v2037 = vmax.f32 %v1989, 0.0
        %v2038 = vmax.f32 %v1992, 0.0
        %v2039 = vmax.f32 %v1997, 0.0
        %v2040 = vmax.f32 %v2000, 0.0
        %v2041 = vmax.f32 %v2005, 0.0
        %v2042 = vmax.f32 %v2008, 0.0
        %v2043 = vld [vmem:[%s5] sm:$0x1]
        %v2044 = vpack.c.bf16 %v2012, %v2011
        %v2045 = vpack.c.bf16 %v2014, %v2013
        %v2046 = vpack.c.bf16 %v2016, %v2015
        %v2047 = vpack.c.bf16 %v2018, %v2017
        %v2048 = vpack.c.bf16 %v2020, %v2019
        %v2049 = vpack.c.bf16 %v2022, %v2021
        %v2050 = vpack.c.bf16 %v2024, %v2023
        %v2051 = vpack.c.bf16 %v2026, %v2025
        %v2052 = vpack.c.bf16 %v2028, %v2027
        %v2053 = vpack.c.bf16 %v2030, %v2029
        %v2054 = vpack.c.bf16 %v2032, %v2031
        %v2055 = vpack.c.bf16 %v2034, %v2033
        %v2056 = vpack.c.bf16 %v2036, %v2035
        %v2057 = vpack.c.bf16 %v2038, %v2037
        %v2058 = vpack.c.bf16 %v2040, %v2039
        %v2059 = vpack.c.bf16 %v2042, %v2041
        %v2060 = vld [vmem:[#allocation2] sm:$0x1]
        %2062 = vset.pattern.permute.xlu0 0
        %2063 = vperm.xlu0 %2062, %v2060
        %v2064 = vpop.permute.xlu0 %2063
        %v2066 = vlaneseq
        %v2067 = vshrl.u32 %v2066, 7
        %v2068 = vsub.s32 0, %v2067
        %v2069 = vrot.slane %v2064, %v2068
        %vm2070 = vcmask 261120
        %v2072 = vsel %vm2070, %v2043, 0
        %v2075 = vsel %vm2070, %v2044, 0
        %v2078 = vsel %vm2070, %v2045, 0
        %v2081 = vsel %vm2070, %v2046, 0
        %v2084 = vsel %vm2070, %v2047, 0
        %v2087 = vsel %vm2070, %v2048, 0
        %v2090 = vsel %vm2070, %v2049, 0
        %v2093 = vsel %vm2070, %v2050, 0
        %v2096 = vsel %vm2070, %v2051, 0
        %v2099 = vsel %vm2070, %v2052, 0
        %v2102 = vsel %vm2070, %v2053, 0
        %v2105 = vsel %vm2070, %v2054, 0
        %v2108 = vsel %vm2070, %v2055, 0
        %v2111 = vsel %vm2070, %v2056, 0
        %v2114 = vsel %vm2070, %v2057, 0
        %v2117 = vsel %vm2070, %v2058, 0
        %v2120 = vsel %vm2070, %v2059, 0
        %2122 = vmatprep.subr.bf16.mxu0 0
        %2123 = vmatpush1.bf16.xpose.msra.mxu0 %v2075
        %2124 = vmatprep.subr.bf16.mxu0 0
        %2125 = vmatpush1.bf16.xpose.msra.mxu0 %v2078
        %2126 = vmatprep.subr.bf16.mxu0 0
        %2127 = vmatpush1.bf16.xpose.msra.mxu0 %v2081
        %2128 = vmatprep.subr.bf16.mxu0 0
        %2129 = vmatpush1.bf16.xpose.msra.mxu0 %v2084
        %2130 = vmatprep.subr.bf16.mxu0 0
        %2131 = vmatpush1.bf16.xpose.msra.mxu0 %v2087
        %2132 = vmatprep.subr.bf16.mxu0 0
        %2133 = vmatpush1.bf16.xpose.msra.mxu0 %v2090
        %2134 = vmatprep.subr.bf16.mxu0 0
        %2135 = vmatpush1.bf16.xpose.msra.mxu0 %v2093
        %2136 = vmatprep.subr.bf16.mxu0 0
        %2137 = vmatpush1.bf16.xpose.msra.mxu0 %v2096
        %2138 = vmatprep.subr.bf16.mxu0 0
        %2139 = vmatpush1.bf16.xpose.msra.mxu0 %v2099
        %2140 = vmatprep.subr.bf16.mxu0 0
        %2141 = vmatpush1.bf16.xpose.msra.mxu0 %v2102
        %2142 = vmatprep.subr.bf16.mxu0 0
        %2143 = vmatpush1.bf16.xpose.msra.mxu0 %v2105
        %2144 = vmatprep.subr.bf16.mxu0 0
        %2145 = vmatpush1.bf16.xpose.msra.mxu0 %v2108
        %2146 = vmatprep.subr.bf16.mxu0 0
        %2147 = vmatpush1.bf16.xpose.msra.mxu0 %v2111
        %2148 = vmatprep.subr.bf16.mxu0 0
        %2149 = vmatpush1.bf16.xpose.msra.mxu0 %v2114
        %2150 = vmatprep.subr.bf16.mxu0 0
        %2151 = vmatpush1.bf16.xpose.msra.mxu0 %v2117
        %2152 = vmatprep.subr.bf16.mxu0 0
        %2153 = vmatpush1.bf16.xpose.msra.mxu0 %v2120
        %2154 = vmatprep.mubr.bf16.mxu0 0
        %2155 = vmatmul.mubr.bf16.gmra.mrb[0].mxu0 %v2072
        %v2156 = vpop.f32.mrb[0].mxu0
        %v2157 = vadd.f32 %v2069, %v2156
        %v2158 = vpop.f32.mrb[0].mxu0
        %v2159 = vadd.f32 %v2069, %v2158
        %v2160 = vpop.f32.mrb[0].mxu0
        %v2161 = vpop.f32.mrb[0].mxu0
        %2162 = vdwg.mxu0
        %v2165 = vcombine.low %v2157, %v2159
        %v2167 = vunpack.c.l.s4 1966171168
        %v2168 = vunpack.c.0.s8 %v2167
        %v2169 = vlaneseq
        %v2170 = vshrl.u32 %v2169, 7
        %v2171 = vsub.s32 %v2168, %v2170
        %v2172 = vrot.slane %v2165, %v2171
        %v2174 = vunpack.c.l.s4 1966171168
        %v2175 = vunpack.c.0.s8 %v2174
        %v2176 = vlaneseq
        %v2177 = vshrl.u32 %v2176, 7
        %v2178 = vsub.s32 %v2175, %v2177
        %v2179 = vrot.slane %v2172, %v2178
        %v2181 = vlaneseq
        %vm2182 = vcmp.ge.s32.totalorder %v2181, 0
        %vm2183 = vcmp.lt.s32.totalorder %v2181, 256
        %vm2184 = vmand %vm2182, %vm2183
        %2185 = vst.msk [vmem:[%s276] sm:$0x3] %vm2184, %v2179
        %s2186 = sand.u32 %s183, 1
        %s2187 = scalar_lea.sflag [#allocation4], %s2186
        %s2188 = sand.u32 %s183, 1
        %s2189 = smul.addr %s2188, 2
        %s2190 = scalar_lea.vmem [#allocation3], %s2189
        // Predicated region
        $region49: #{tpu_custom_call.1} parent=47 // pred_check
          %p2191 = pneg %p193
        $region50: #{tpu_custom_call.1} parent=47 // pred_check_branch
          %2193 = sbr.rel (%p2191) target = $region52
        $region51: #{tpu_custom_call.1} parent=47 // pred_region
          %s2194 = smul.u32 2, %s23
          %s2196 = ssub.s32 32, 32
          %2197 = vsyncadd %s2187, %s2196
          %s2198 = smul.addr %s2194, 16
          %s2199 = scalar_lea.hbm %s7, %s2198
          %s2201 = sshll.u32 %s2190, 4
          %s2202 = int_to_ptr.vmem [resolvable:$true] %s2201
          %2204 = dma.vmem_to_hbm [thread:$0]  %s2202, 32, %s2199, %s2187
        $region52: #{tpu_custom_call.1} parent=47 // pred_fallthru
          _
      $region48: #{tpu_custom_call.1} parent=5 // pred_fallthru
        _
      %p2205 = scmp.le.s32.totalorder 2, %s18
      // Predicated region
      $region53: #{tpu_custom_call.1} parent=5 // pred_check
        %p2206 = pneg %p2205
      $region54: #{tpu_custom_call.1} parent=5 // pred_check_branch
        %2208 = sbr.rel (%p2206) target = $region56
      $region55: #{tpu_custom_call.1} parent=5 // pred_region
        %s2209 = ssub.s32 %s18, 2
        // Predicated region
        $region57: #{tpu_custom_call.1} parent=55 // pred_check
          %p2210 = pneg %p199
        $region58: #{tpu_custom_call.1} parent=55 // pred_check_branch
          %2212 = sbr.rel (%p2210) target = $region60
        $region59: #{tpu_custom_call.1} parent=55 // pred_region
          %s2213 = sand.u32 %s184, 1
          %s2214 = scalar_lea.sflag [#allocation4], %s2213
          %s2215 = sand.u32 %s184, 1
          %s2216 = smul.addr %s2215, 2
          %s2217 = scalar_lea.vmem [#allocation3], %s2216
          %2218 = dma.done %s2214, 32
        $region60: #{tpu_custom_call.1} parent=55 // pred_fallthru
          _
      $region56: #{tpu_custom_call.1} parent=5 // pred_fallthru
        _
    $region6: #{tpu_custom_call.1} parent=1 // loop_footer
      %s22 = sadd.s32 1, %s18
    $region7: #{tpu_custom_call.1} parent=1 // loop_footer_branch
      %17 = sbr.rel target = $region3
    $region8: #{tpu_custom_call.1} parent=1 // loop_exit
      _
    %2219 = vsyncpa [#allocation4], 1
    %s2220 = scalar_lea.sflag [#allocation4], 1
    %2221 = vsyncpa %s2220, 1

</llo_original>
